<compile_context>
chip_gen: v7x
topology: tpu7x:2x2x1
jax: 0.10.0
libtpu: 0.0.40
codegen_flags: <defaults>
</compile_context>

<pallas_src>
import functools

import jax
import jax.numpy as jnp
from jax.experimental import pallas as pl
from jax.experimental.pallas import tpu as pltpu


def _round_up(n, m):
    return ((n + m - 1) // m) * m


def pack_params(w1, b1, w2, b2):
    """Pack (w1, b1, w2^T, b2) into one (8, H) f32 tile. Call ONCE at load time."""
    d_in, hidden = w1.shape
    assert d_in + 3 <= 8, "packed-parameter layout assumes input_dim <= 5"
    p = jnp.zeros((8, hidden), jnp.float32)
    p = p.at[:d_in, :].set(w1.astype(jnp.float32))
    p = p.at[d_in, :].set(b1.reshape(hidden).astype(jnp.float32))
    p = p.at[d_in + 1, :].set(w2.reshape(hidden).astype(jnp.float32))
    p = p.at[d_in + 2, 0].set(jnp.reshape(b2, ()).astype(jnp.float32))
    return p


def mlp_kernel(x_ref, p_ref, o_ref, *, d_in):
    # x_ref: (tb, d_in)   p_ref: (8, H) packed params   o_ref: (tb//128, 128)
    x = x_ref[...]
    tb = x.shape[0]
    w1 = p_ref[0:d_in, :]                 # (d_in, H)
    b1 = p_ref[d_in:d_in + 1, :]          # (1, H)
    w2 = p_ref[d_in + 1:d_in + 2, :]      # (1, H)  fc2 weight as a row
    b2 = p_ref[d_in + 2:d_in + 3, 0:1]    # (1, 1)

    # fc1 on the MXU, f32 accumulation; ReLU on the VPU.
    h = jnp.dot(x, w1, preferred_element_type=jnp.float32) + b1
    h = jnp.maximum(h, 0.0)

    # fc2: N=1 matmul wastes the MXU -> VPU multiply + lane reduce. Reduce on the
    # (tb//128, 128, H) view (free split of the sublane-major leading dim) so the
    # per-row sums land directly in a lane-dense (tb//128, 128) block.
    hw = h * w2
    y = jnp.sum(hw.reshape(tb // 128, 128, hw.shape[1]), axis=-1) + b2
    o_ref[...] = y.astype(o_ref.dtype)


def dummy_model_forward(x, packed_params, *, tb=8192):
    """x: [B, D_in] f32; packed_params: [8, H] f32 from pack_params -> [B, 1] f32."""
    B, D = x.shape
    H = packed_params.shape[1]

    # tb must be a multiple of 1024 so the lane-dense output block (tb//128, 128)
    # has a sublane dim divisible by 8; clamp so tiny batches don't over-allocate.
    tb = max(1024, min(_round_up(tb, 1024), _round_up(B, 1024)))
    nb = pl.cdiv(B, tb)          # partial final x block is clamped by Pallas
    g = tb // 128                # output rows per step (lane-dense layout)

    out = pl.pallas_call(
        functools.partial(mlp_kernel, d_in=D),
        out_shape=jax.ShapeDtypeStruct((nb * g, 128), jnp.float32),
        grid_spec=pltpu.PrefetchScalarGridSpec(
            num_scalar_prefetch=0,
            grid=(nb,),
            in_specs=[
                pl.BlockSpec((tb, D), lambda i: (i, 0)),   # this step's rows
                pl.BlockSpec((8, H), lambda i: (0, 0)),    # packed params, resident
            ],
            out_specs=pl.BlockSpec((g, 128), lambda i: (i, 0)),  # lane-dense block
        ),
        compiler_params=pltpu.CompilerParams(
            # Batch steps are independent -> shard across both TCs on v7x.
            dimension_semantics=("parallel",),
            # 48 MiB: safe on v7x (64 MiB physical); raise to ~96-112 MiB (and tb
            # to 16K-32K) on v5e/v6e if profiling shows step overhead still dominates.
            vmem_limit_bytes=48 * 1024 * 1024,
        ),
    )(x, packed_params)

    # (nb*g, 128) -> flat -> first B rows -> (B, 1). Row-major reshapes are free.
    return out.reshape(-1)[:B].reshape(B, 1)


def init_params(key, input_dim=5, hidden=64, out_dim=1):
    k1, k2, k3, k4 = jax.random.split(key, 4)
    bound1 = 1.0 / (input_dim ** 0.5)
    bound2 = 1.0 / (hidden ** 0.5)
    w1 = jax.random.uniform(k1, (input_dim, hidden), jnp.float32, -bound1, bound1)
    b1 = jax.random.uniform(k2, (hidden,), jnp.float32, -bound1, bound1)
    w2 = jax.random.uniform(k3, (hidden, out_dim), jnp.float32, -bound2, bound2)
    b2 = jax.random.uniform(k4, (out_dim,), jnp.float32, -bound2, bound2)
    return w1, b1, w2, b2


def _reference(x, w1, b1, w2, b2):
    h = jnp.maximum(x @ w1 + b1[None, :], 0.0)
    return h @ w2 + b2[None, :]


if __name__ == "__main__":
    key = jax.random.PRNGKey(0)
    kx1, kx2, kp = jax.random.split(key, 3)

    input_dim, hidden = 5, 64
    w1, b1, w2, b2 = init_params(kp, input_dim=input_dim, hidden=hidden)
    params = pack_params(w1, b1, w2, b2)   # packed once, reused every call

    fwd_small_tile = jax.jit(functools.partial(dummy_model_forward, tb=1024))
    fwd_default = jax.jit(dummy_model_forward)

    # Case 1: multi-step grid with a partial final input block (2500 = 2*1024 + 452).
    x1 = jax.random.normal(kx1, (2500, input_dim), jnp.float32)
    out1 = jax.block_until_ready(fwd_small_tile(x1, params))
    ref1 = _reference(x1, w1, b1, w2, b2)
    assert out1.shape == (2500, 1)
    assert jnp.allclose(out1, ref1, atol=1e-4, rtol=1e-4), "mismatch (multi-step case)"

    # Case 2: small, non-aligned batch (single partial block, default tb clamp path).
    x2 = jax.random.normal(kx2, (37, input_dim), jnp.float32)
    out2 = jax.block_until_ready(fwd_default(x2, params))
    ref2 = _reference(x2, w1, b1, w2, b2)
    assert out2.shape == (37, 1)
    assert jnp.allclose(out2, ref2, atol=1e-4, rtol=1e-4), "mismatch (small-batch case)"

    print("KERNEL_OK")
</pallas_src>

<mosaic_0001>
module attributes {stable_mosaic.version = 11 : i64} {
  func.func @mlp_kernel(%arg0: i32, %arg1: memref<1024x5xf32, #tpu.memory_space<vmem>>, %arg2: memref<8x64xf32, #tpu.memory_space<vmem>>, %arg3: memref<8x128xf32, #tpu.memory_space<vmem>>) attributes {dimension_semantics = [#tpu.dimension_semantics<parallel>], iteration_bounds = array<i64: 3>, scalar_prefetch = 0 : i64, scratch_operands = 0 : i64, tpu.core_type = #tpu.core_type<tc>, window_params = [{transform_indices = @transform_0, window_bounds = array<i64: 1024, 5>}, {pipeline_mode = #tpu.pipeline_mode<synchronous>, transform_indices = @transform_1, window_bounds = array<i64: 8, 64>}, {transform_indices = @transform_2, window_bounds = array<i64: 8, 128>}]} {
    %c0 = arith.constant 0 : index
    %c0_0 = arith.constant 0 : index
    %0 = vector.load %arg1[%c0, %c0_0] : memref<1024x5xf32, #tpu.memory_space<vmem>>, vector<1024x5xf32>
    %c0_1 = arith.constant 0 : index
    %c0_2 = arith.constant 0 : index
    %1 = vector.load %arg2[%c0_1, %c0_2] : memref<8x64xf32, #tpu.memory_space<vmem>>, vector<5x64xf32>
    %c5 = arith.constant 5 : index
    %c0_3 = arith.constant 0 : index
    %2 = vector.load %arg2[%c5, %c0_3] : memref<8x64xf32, #tpu.memory_space<vmem>>, vector<1x64xf32>
    %c6 = arith.constant 6 : index
    %c0_4 = arith.constant 0 : index
    %3 = vector.load %arg2[%c6, %c0_4] : memref<8x64xf32, #tpu.memory_space<vmem>>, vector<1x64xf32>
    %c7 = arith.constant 7 : index
    %c0_5 = arith.constant 0 : index
    %4 = vector.load %arg2[%c7, %c0_5] : memref<8x64xf32, #tpu.memory_space<vmem>>, vector<1x1xf32>
    %cst = arith.constant dense<0.000000e+00> : vector<1024x64xf32>
    %5 = tpu.matmul %0, %1, %cst {dimension_numbers = #tpu.dot_dimension_numbers<[1], [0], [0], [1], [0, 0, 1, 1], [], []>} : vector<1024x5xf32>, vector<5x64xf32>, vector<1024x64xf32> -> vector<1024x64xf32>
    %6 = vector.broadcast %2 : vector<1x64xf32> to vector<1024x64xf32>
    %7 = arith.addf %5, %6 : vector<1024x64xf32>
    %cst_6 = arith.constant 0.000000e+00 : f32
    %8 = vector.broadcast %cst_6 : f32 to vector<1024x64xf32>
    %9 = arith.maximumf %7, %8 : vector<1024x64xf32>
    %10 = vector.broadcast %3 : vector<1x64xf32> to vector<1024x64xf32>
    %11 = arith.mulf %9, %10 : vector<1024x64xf32>
    %12 = vector.shape_cast %11 : vector<1024x64xf32> to vector<8x128x64xf32>
    %cst_7 = arith.constant dense<0.000000e+00> : vector<8x128xf32>
    %13 = vector.multi_reduction <add>, %12, %cst_7 [2] : vector<8x128x64xf32> to vector<8x128xf32>
    %14 = vector.broadcast %4 : vector<1x1xf32> to vector<8x128xf32>
    %15 = arith.addf %13, %14 : vector<8x128xf32>
    %c0_8 = arith.constant 0 : index
    %c0_9 = arith.constant 0 : index
    %16 = vector.load %arg3[%c0_8, %c0_9] : memref<8x128xf32, #tpu.memory_space<vmem>>, vector<8x128xf32>
    tpu.vector_store %arg3[%c0_8, %c0_9], %15 {strides = array<i32>} : memref<8x128xf32, #tpu.memory_space<vmem>>, vector<8x128xf32>,
    return
  }
  func.func @transform_0(%arg0: i32) -> (i32, i32) {
    %c0_i32 = arith.constant 0 : i32
    %c0_i32_0 = arith.constant 0 : i32
    return %arg0, %c0_i32 : i32, i32
  }
  func.func @transform_1(%arg0: i32) -> (i32, i32) {
    %c0_i32 = arith.constant 0 : i32
    %c0_i32_0 = arith.constant 0 : i32
    %c0_i32_1 = arith.constant 0 : i32
    return %c0_i32, %c0_i32_0 : i32, i32
  }
  func.func @transform_2(%arg0: i32) -> (i32, i32) {
    %c0_i32 = arith.constant 0 : i32
    %c0_i32_0 = arith.constant 0 : i32
    return %arg0, %c0_i32 : i32, i32
  }
}

</mosaic_0001>

<llo_original>
// kernel: dummy_model_forward.1
$region0: #{dummy_model_forward.1}
  #allocation0 [shape = 'u32[]', space=smem, size = 0x4, offset = 0x4, fixed_abs, tag = 'smem constant byte address 0x4 - core index']
  #allocation1 [shape = 'u32[144,128]{1,0:T(1,128)}', space=vmem, size = 0x12000, scoped, tag = 'internal scratch']
  %s0 = inlined_call_operand.vmem [shape: f32[2500,5], index: 0, kind: input, shape index: {}]
  %s1 = inlined_call_operand.vmem [shape: f32[8,64], index: 1, kind: input, shape index: {}]
  %s2 = inlined_call_operand.vmem [shape: f32[24,128], index: 2, kind: output, shape index: {}]
  %s3 = sld [smem:[#allocation0]]
  $region41: #{dummy_model_forward.1} parent=0
    _
  %s5 = ssub.s32 1, %s3
  %s6 = scalar_select 0, %s5, %s3
  loop: start=0, step=1, limit=5
  $region2: #{dummy_model_forward.1} parent=0 // loop_pre_header
    _
  $region3: #{dummy_model_forward.1} parent=0 // loop_header
    %s8 = sphi 0, %s12
    %p9 = scmp.ge.s32.totalorder %s8, 5
    %s18 = sphi 0, %s20
    %s21 = sphi 0, %s18
    %s22 = sphi 0, %s21
    %s38 = sphi 0, %s22
    %s42 = sphi 0, %s42
    %s44 = sphi 0, %s42
    %s45 = sphi 0, %s44
    %s59 = sphi 0, %s45
    %s65 = sphi 0, %s67
    %s68 = sphi 0, %s65
    %s69 = sphi 0, %s68
    %s85 = sphi 0, %s69
  $region4: #{dummy_model_forward.1} parent=0 // loop_header_branch
    %11 = sbr.rel (%p9) target = $region8
  $region5: #{dummy_model_forward.1} parent=0 // loop_body
    %s13 = ssub.s32 %s8, 1
    %s14 = ssub.s32 %s8, 2
    %s15 = sadd.s32 %s8, 1
    %s16 = ssub.s32 %s8, %s15
    %p17 = scmp.eq.s32.totalorder %s16, 0
    %s19 = sadd.s32 %s18, 1
    %s20 = scalar_select %p17, %s18, %s19
    %p23 = pneg %p17
    %p24 = scmp.eq.s32.totalorder %s8, 2
    %p25 = por %p23, %p24
    %p26 = scmp.ne.s32.totalorder %s18, %s21
    %p27 = scmp.eq.s32.totalorder %s8, 0
    %p28 = por %p26, %p27
    %p29 = scmp.ne.s32.totalorder %s18, %s21
    %p30 = scmp.eq.s32.totalorder %s13, 2
    %p31 = por %p29, %p30
    %p32 = scmp.ne.s32.totalorder %s21, %s22
    %p33 = scmp.eq.s32.totalorder %s13, 0
    %p34 = por %p32, %p33
    %p35 = scmp.ne.s32.totalorder %s21, %s22
    %p36 = scmp.eq.s32.totalorder %s14, 2
    %p37 = por %p35, %p36
    %p39 = scmp.ne.s32.totalorder %s22, %s38
    %p40 = scmp.eq.s32.totalorder %s14, 0
    %p41 = por %p39, %p40
    %s43 = sadd.s32 %s42, 1
    %p46 = scmp.eq.s32.totalorder %s8, 2
    %p47 = scmp.ne.s32.totalorder %s42, %s44
    %p48 = scmp.eq.s32.totalorder %s8, 0
    %p49 = por %p47, %p48
    %p50 = scmp.ne.s32.totalorder %s42, %s44
    %p51 = scmp.eq.s32.totalorder %s13, 2
    %p52 = por %p50, %p51
    %p53 = scmp.ne.s32.totalorder %s44, %s45
    %p54 = scmp.eq.s32.totalorder %s13, 0
    %p55 = por %p53, %p54
    %p56 = scmp.ne.s32.totalorder %s44, %s45
    %p57 = scmp.eq.s32.totalorder %s14, 2
    %p58 = por %p56, %p57
    %p60 = scmp.ne.s32.totalorder %s45, %s59
    %p61 = scmp.eq.s32.totalorder %s14, 0
    %p62 = por %p60, %p61
    %s63 = ssub.s32 %s8, %s15
    %p64 = scmp.eq.s32.totalorder %s63, 0
    %s66 = sadd.s32 %s65, 1
    %s67 = scalar_select %p64, %s65, %s66
    %p70 = pneg %p64
    %p71 = scmp.eq.s32.totalorder %s8, 2
    %p72 = por %p70, %p71
    %p73 = scmp.ne.s32.totalorder %s65, %s68
    %p74 = scmp.eq.s32.totalorder %s8, 0
    %p75 = por %p73, %p74
    %p76 = scmp.ne.s32.totalorder %s65, %s68
    %p77 = scmp.eq.s32.totalorder %s13, 2
    %p78 = por %p76, %p77
    %p79 = scmp.ne.s32.totalorder %s68, %s69
    %p80 = scmp.eq.s32.totalorder %s13, 0
    %p81 = por %p79, %p80
    %p82 = scmp.ne.s32.totalorder %s68, %s69
    %p83 = scmp.eq.s32.totalorder %s14, 2
    %p84 = por %p82, %p83
    %p86 = scmp.ne.s32.totalorder %s69, %s85
    %p87 = scmp.eq.s32.totalorder %s14, 0
    %p88 = por %p86, %p87
    %p89 = scmp.le.s32.totalorder 1, %s8
    %p90 = scmp.lt.s32.totalorder %s8, 4
    %p91 = pnand %p89, %p90
    %p92 = pneg %p91
    // Predicated region
    $region9: #{dummy_model_forward.1} parent=5 // pred_check
      _
    $region10: #{dummy_model_forward.1} parent=5 // pred_check_branch
      %94 = sbr.rel (%p91) target = $region12
    $region11: #{dummy_model_forward.1} parent=5 // pred_region
      %s95 = ssub.s32 %s8, 1
      // Predicated region
      $region13: #{dummy_model_forward.1} parent=11 // pred_check
        %p96 = pneg %p55
      $region14: #{dummy_model_forward.1} parent=11 // pred_check_branch
        %98 = sbr.rel (%p96) target = $region16
      $region15: #{dummy_model_forward.1} parent=11 // pred_region
        _
      $region16: #{dummy_model_forward.1} parent=11 // pred_fallthru
        _
    $region12: #{dummy_model_forward.1} parent=5 // pred_fallthru
      _
    %p99 = scmp.lt.s32.totalorder %s8, 3
    // Predicated region
    $region17: #{dummy_model_forward.1} parent=5 // pred_check
      %p100 = pneg %p99
    $region18: #{dummy_model_forward.1} parent=5 // pred_check_branch
      %102 = sbr.rel (%p100) target = $region20
    $region19: #{dummy_model_forward.1} parent=5 // pred_region
      // Predicated region
      $region21: #{dummy_model_forward.1} parent=19 // pred_check
        %p103 = pneg %p28
      $region22: #{dummy_model_forward.1} parent=19 // pred_check_branch
        %105 = sbr.rel (%p103) target = $region24
      $region23: #{dummy_model_forward.1} parent=19 // pred_region
        %s106 = smul.u32 128, %s8
        %s107 = ssub.s32 313, %s106
        %p108 = scmp.lt.s32.totalorder %s107, 128
        %s109 = scalar_select %p108, %s107, 128
        %s110 = smul.u32 128, %s109
        %p111 = scmp.lt.s32.totalorder %s106, 312
        %s112 = scalar_select %p111, %s106, 312
        %s113 = smul.addr %s112, 8
        %s114 = scalar_lea.vmem %s0, %s113
        %s115 = smul.u32 128, %s8
        %s116 = ssub.s32 313, %s115
        %p117 = scmp.lt.s32.totalorder %s116, 128
        %s118 = scalar_select %p117, %s116, 128
        %s119 = smul.u32 128, %s118
      $region24: #{dummy_model_forward.1} parent=19 // pred_fallthru
        _
    $region20: #{dummy_model_forward.1} parent=5 // pred_fallthru
      _
    %p120 = scmp.le.s32.totalorder 1, %s8
    %p121 = scmp.lt.s32.totalorder %s8, 4
    %p122 = pnand %p120, %p121
    %p123 = pneg %p122
    // Predicated region
    $region25: #{dummy_model_forward.1} parent=5 // pred_check
      _
    $region26: #{dummy_model_forward.1} parent=5 // pred_check_branch
      %125 = sbr.rel (%p122) target = $region28
    $region27: #{dummy_model_forward.1} parent=5 // pred_region
      %s126 = ssub.s32 %s8, 1
      %s127 = smul.u32 128, %s13
      %s128 = ssub.s32 313, %s127
      %p129 = scmp.lt.s32.totalorder %s128, 128
      %s130 = scalar_select %p129, %s128, 128
      %s131 = smul.u32 128, %s130
      %p132 = scmp.lt.s32.totalorder %s127, 312
      %s133 = scalar_select %p132, %s127, 312
      %s134 = smul.addr %s133, 8
      %s135 = scalar_lea.vmem %s0, %s134
      %p136 = pneg %p34
      %p137 = pneg %p31
      %p138 = pneg %p55
      %p139 = pneg %p52
      %p140 = pneg %p81
      %p141 = pneg %p78
      %p142 = scmp.lt.s32.totalorder %s13, 2
      %s143 = scalar_select %p142, %s13, 2
      %s144 = smul.addr %s143, 8
      %s145 = scalar_lea.vmem %s2, %s144
      %s146 = smul.u32 128, %s13
      %s147 = ssub.s32 313, %s146
      %p148 = scmp.lt.s32.totalorder %s147, 128
      %s149 = scalar_select %p148, %s147, 128
      %s150 = smul.u32 128, %s149
      %p151 = scmp.lt.s32.totalorder %s146, 312
      %s152 = scalar_select %p151, %s146, 312
      %s153 = smul.addr %s152, 8
      %s154 = scalar_lea.vmem %s0, %s153
      %s155 = smul.u32 128, %s13
      %s156 = ssub.s32 313, %s155
      %p157 = scmp.lt.s32.totalorder %s156, 128
      %s158 = scalar_select %p157, %s156, 128
      %s159 = smul.u32 128, %s158
      %p160 = scmp.lt.s32.totalorder %s13, 2
      %s161 = scalar_select %p160, %s13, 2
      %s162 = smul.addr %s161, 8
      %s163 = scalar_lea.vmem %s2, %s162
      %v164 = vld [vmem:[%s154] sm:$0xff]
      %v165 = vld [vmem:[%s154 + $0x8] sm:$0xff]
      %v166 = vld [vmem:[%s154 + $0x10] sm:$0xff]
      %v167 = vld [vmem:[%s154 + $0x18] sm:$0xff]
      %v168 = vld [vmem:[%s154 + $0x20] sm:$0xff]
      %v169 = vld [vmem:[%s154 + $0x28] sm:$0xff]
      %v170 = vld [vmem:[%s154 + $0x30] sm:$0xff]
      %v171 = vld [vmem:[%s154 + $0x38] sm:$0xff]
      %v172 = vld [vmem:[%s154 + $0x40] sm:$0xff]
      %v173 = vld [vmem:[%s154 + $0x48] sm:$0xff]
      %v174 = vld [vmem:[%s154 + $0x50] sm:$0xff]
      %v175 = vld [vmem:[%s154 + $0x58] sm:$0xff]
      %v176 = vld [vmem:[%s154 + $0x60] sm:$0xff]
      %v177 = vld [vmem:[%s154 + $0x68] sm:$0xff]
      %v178 = vld [vmem:[%s154 + $0x70] sm:$0xff]
      %v179 = vld [vmem:[%s154 + $0x78] sm:$0xff]
      %v180 = vld [vmem:[%s154 + $0x80] sm:$0xff]
      %v181 = vld [vmem:[%s154 + $0x88] sm:$0xff]
      %v182 = vld [vmem:[%s154 + $0x90] sm:$0xff]
      %v183 = vld [vmem:[%s154 + $0x98] sm:$0xff]
      %v184 = vld [vmem:[%s154 + $0xa0] sm:$0xff]
      %v185 = vld [vmem:[%s154 + $0xa8] sm:$0xff]
      %v186 = vld [vmem:[%s154 + $0xb0] sm:$0xff]
      %v187 = vld [vmem:[%s154 + $0xb8] sm:$0xff]
      %v188 = vld [vmem:[%s154 + $0xc0] sm:$0xff]
      %v189 = vld [vmem:[%s154 + $0xc8] sm:$0xff]
      %v190 = vld [vmem:[%s154 + $0xd0] sm:$0xff]
      %v191 = vld [vmem:[%s154 + $0xd8] sm:$0xff]
      %v192 = vld [vmem:[%s154 + $0xe0] sm:$0xff]
      %v193 = vld [vmem:[%s154 + $0xe8] sm:$0xff]
      %v194 = vld [vmem:[%s154 + $0xf0] sm:$0xff]
      %v195 = vld [vmem:[%s154 + $0xf8] sm:$0xff]
      %v196 = vld [vmem:[%s154 + $0x100] sm:$0xff]
      %v197 = vld [vmem:[%s154 + $0x108] sm:$0xff]
      %v198 = vld [vmem:[%s154 + $0x110] sm:$0xff]
      %v199 = vld [vmem:[%s154 + $0x118] sm:$0xff]
      %v200 = vld [vmem:[%s154 + $0x120] sm:$0xff]
      %v201 = vld [vmem:[%s154 + $0x128] sm:$0xff]
      %v202 = vld [vmem:[%s154 + $0x130] sm:$0xff]
      %v203 = vld [vmem:[%s154 + $0x138] sm:$0xff]
      %v204 = vld [vmem:[%s154 + $0x140] sm:$0xff]
      %v205 = vld [vmem:[%s154 + $0x148] sm:$0xff]
      %v206 = vld [vmem:[%s154 + $0x150] sm:$0xff]
      %v207 = vld [vmem:[%s154 + $0x158] sm:$0xff]
      %v208 = vld [vmem:[%s154 + $0x160] sm:$0xff]
      %v209 = vld [vmem:[%s154 + $0x168] sm:$0xff]
      %v210 = vld [vmem:[%s154 + $0x170] sm:$0xff]
      %v211 = vld [vmem:[%s154 + $0x178] sm:$0xff]
      %v212 = vld [vmem:[%s154 + $0x180] sm:$0xff]
      %v213 = vld [vmem:[%s154 + $0x188] sm:$0xff]
      %v214 = vld [vmem:[%s154 + $0x190] sm:$0xff]
      %v215 = vld [vmem:[%s154 + $0x198] sm:$0xff]
      %v216 = vld [vmem:[%s154 + $0x1a0] sm:$0xff]
      %v217 = vld [vmem:[%s154 + $0x1a8] sm:$0xff]
      %v218 = vld [vmem:[%s154 + $0x1b0] sm:$0xff]
      %v219 = vld [vmem:[%s154 + $0x1b8] sm:$0xff]
      %v220 = vld [vmem:[%s154 + $0x1c0] sm:$0xff]
      %v221 = vld [vmem:[%s154 + $0x1c8] sm:$0xff]
      %v222 = vld [vmem:[%s154 + $0x1d0] sm:$0xff]
      %v223 = vld [vmem:[%s154 + $0x1d8] sm:$0xff]
      %v224 = vld [vmem:[%s154 + $0x1e0] sm:$0xff]
      %v225 = vld [vmem:[%s154 + $0x1e8] sm:$0xff]
      %v226 = vld [vmem:[%s154 + $0x1f0] sm:$0xff]
      %v227 = vld [vmem:[%s154 + $0x1f8] sm:$0xff]
      %v228 = vld [vmem:[%s154 + $0x200] sm:$0xff]
      %v229 = vld [vmem:[%s154 + $0x208] sm:$0xff]
      %v230 = vld [vmem:[%s154 + $0x210] sm:$0xff]
      %v231 = vld [vmem:[%s154 + $0x218] sm:$0xff]
      %v232 = vld [vmem:[%s154 + $0x220] sm:$0xff]
      %v233 = vld [vmem:[%s154 + $0x228] sm:$0xff]
      %v234 = vld [vmem:[%s154 + $0x230] sm:$0xff]
      %v235 = vld [vmem:[%s154 + $0x238] sm:$0xff]
      %v236 = vld [vmem:[%s154 + $0x240] sm:$0xff]
      %v237 = vld [vmem:[%s154 + $0x248] sm:$0xff]
      %v238 = vld [vmem:[%s154 + $0x250] sm:$0xff]
      %v239 = vld [vmem:[%s154 + $0x258] sm:$0xff]
      %v240 = vld [vmem:[%s154 + $0x260] sm:$0xff]
      %v241 = vld [vmem:[%s154 + $0x268] sm:$0xff]
      %v242 = vld [vmem:[%s154 + $0x270] sm:$0xff]
      %v243 = vld [vmem:[%s154 + $0x278] sm:$0xff]
      %v244 = vld [vmem:[%s154 + $0x280] sm:$0xff]
      %v245 = vld [vmem:[%s154 + $0x288] sm:$0xff]
      %v246 = vld [vmem:[%s154 + $0x290] sm:$0xff]
      %v247 = vld [vmem:[%s154 + $0x298] sm:$0xff]
      %v248 = vld [vmem:[%s154 + $0x2a0] sm:$0xff]
      %v249 = vld [vmem:[%s154 + $0x2a8] sm:$0xff]
      %v250 = vld [vmem:[%s154 + $0x2b0] sm:$0xff]
      %v251 = vld [vmem:[%s154 + $0x2b8] sm:$0xff]
      %v252 = vld [vmem:[%s154 + $0x2c0] sm:$0xff]
      %v253 = vld [vmem:[%s154 + $0x2c8] sm:$0xff]
      %v254 = vld [vmem:[%s154 + $0x2d0] sm:$0xff]
      %v255 = vld [vmem:[%s154 + $0x2d8] sm:$0xff]
      %v256 = vld [vmem:[%s154 + $0x2e0] sm:$0xff]
      %v257 = vld [vmem:[%s154 + $0x2e8] sm:$0xff]
      %v258 = vld [vmem:[%s154 + $0x2f0] sm:$0xff]
      %v259 = vld [vmem:[%s154 + $0x2f8] sm:$0xff]
      %v260 = vld [vmem:[%s154 + $0x300] sm:$0xff]
      %v261 = vld [vmem:[%s154 + $0x308] sm:$0xff]
      %v262 = vld [vmem:[%s154 + $0x310] sm:$0xff]
      %v263 = vld [vmem:[%s154 + $0x318] sm:$0xff]
      %v264 = vld [vmem:[%s154 + $0x320] sm:$0xff]
      %v265 = vld [vmem:[%s154 + $0x328] sm:$0xff]
      %v266 = vld [vmem:[%s154 + $0x330] sm:$0xff]
      %v267 = vld [vmem:[%s154 + $0x338] sm:$0xff]
      %v268 = vld [vmem:[%s154 + $0x340] sm:$0xff]
      %v269 = vld [vmem:[%s154 + $0x348] sm:$0xff]
      %v270 = vld [vmem:[%s154 + $0x350] sm:$0xff]
      %v271 = vld [vmem:[%s154 + $0x358] sm:$0xff]
      %v272 = vld [vmem:[%s154 + $0x360] sm:$0xff]
      %v273 = vld [vmem:[%s154 + $0x368] sm:$0xff]
      %v274 = vld [vmem:[%s154 + $0x370] sm:$0xff]
      %v275 = vld [vmem:[%s154 + $0x378] sm:$0xff]
      %v276 = vld [vmem:[%s154 + $0x380] sm:$0xff]
      %v277 = vld [vmem:[%s154 + $0x388] sm:$0xff]
      %v278 = vld [vmem:[%s154 + $0x390] sm:$0xff]
      %v279 = vld [vmem:[%s154 + $0x398] sm:$0xff]
      %v280 = vld [vmem:[%s154 + $0x3a0] sm:$0xff]
      %v281 = vld [vmem:[%s154 + $0x3a8] sm:$0xff]
      %v282 = vld [vmem:[%s154 + $0x3b0] sm:$0xff]
      %v283 = vld [vmem:[%s154 + $0x3b8] sm:$0xff]
      %v284 = vld [vmem:[%s154 + $0x3c0] sm:$0xff]
      %v285 = vld [vmem:[%s154 + $0x3c8] sm:$0xff]
      %v286 = vld [vmem:[%s154 + $0x3d0] sm:$0xff]
      %v287 = vld [vmem:[%s154 + $0x3d8] sm:$0xff]
      %v288 = vld [vmem:[%s154 + $0x3e0] sm:$0xff]
      %v289 = vld [vmem:[%s154 + $0x3e8] sm:$0xff]
      %v290 = vld [vmem:[%s154 + $0x3f0] sm:$0xff]
      %v291 = vld [vmem:[%s154 + $0x3f8] sm:$0xff]
      %v292 = vld [vmem:[%s1] sm:$0x1f]
      %v293 = vld [vmem:[%s1 + $0x5] sm:$0x1]
      %v294 = vld [vmem:[%s1 + $0x6] sm:$0x1]
      %v295 = vld [vmem:[%s1 + $0x7] sm:$0x1]
      %v296 = vlaneseq
      %v297 = vshrl.u32 %v296, 7
      %v298 = vsub.s32 0, %v297
      %v299 = vrot.slane %v293, %v298
      %vm300 = vcmask 39936
      %v302 = vsel %vm300, %v164, 0
      %v305 = vsel %vm300, %v165, 0
      %v308 = vsel %vm300, %v166, 0
      %v311 = vsel %vm300, %v167, 0
      %v314 = vsel %vm300, %v168, 0
      %v317 = vsel %vm300, %v169, 0
      %v320 = vsel %vm300, %v170, 0
      %v323 = vsel %vm300, %v171, 0
      %v326 = vsel %vm300, %v172, 0
      %v329 = vsel %vm300, %v173, 0
      %v332 = vsel %vm300, %v174, 0
      %v335 = vsel %vm300, %v175, 0
      %v338 = vsel %vm300, %v176, 0
      %v341 = vsel %vm300, %v177, 0
      %v344 = vsel %vm300, %v178, 0
      %v347 = vsel %vm300, %v179, 0
      %v350 = vsel %vm300, %v180, 0
      %v353 = vsel %vm300, %v181, 0
      %v356 = vsel %vm300, %v182, 0
      %v359 = vsel %vm300, %v183, 0
      %v362 = vsel %vm300, %v184, 0
      %v365 = vsel %vm300, %v185, 0
      %v368 = vsel %vm300, %v186, 0
      %v371 = vsel %vm300, %v187, 0
      %v374 = vsel %vm300, %v188, 0
      %v377 = vsel %vm300, %v189, 0
      %v380 = vsel %vm300, %v190, 0
      %v383 = vsel %vm300, %v191, 0
      %v386 = vsel %vm300, %v192, 0
      %v389 = vsel %vm300, %v193, 0
      %v392 = vsel %vm300, %v194, 0
      %v395 = vsel %vm300, %v195, 0
      %v398 = vsel %vm300, %v196, 0
      %v401 = vsel %vm300, %v197, 0
      %v404 = vsel %vm300, %v198, 0
      %v407 = vsel %vm300, %v199, 0
      %v410 = vsel %vm300, %v200, 0
      %v413 = vsel %vm300, %v201, 0
      %v416 = vsel %vm300, %v202, 0
      %v419 = vsel %vm300, %v203, 0
      %v422 = vsel %vm300, %v204, 0
      %v425 = vsel %vm300, %v205, 0
      %v428 = vsel %vm300, %v206, 0
      %v431 = vsel %vm300, %v207, 0
      %v434 = vsel %vm300, %v208, 0
      %v437 = vsel %vm300, %v209, 0
      %v440 = vsel %vm300, %v210, 0
      %v443 = vsel %vm300, %v211, 0
      %v446 = vsel %vm300, %v212, 0
      %v449 = vsel %vm300, %v213, 0
      %v452 = vsel %vm300, %v214, 0
      %v455 = vsel %vm300, %v215, 0
      %v458 = vsel %vm300, %v216, 0
      %v461 = vsel %vm300, %v217, 0
      %v464 = vsel %vm300, %v218, 0
      %v467 = vsel %vm300, %v219, 0
      %v470 = vsel %vm300, %v220, 0
      %v473 = vsel %vm300, %v221, 0
      %v476 = vsel %vm300, %v222, 0
      %v479 = vsel %vm300, %v223, 0
      %v482 = vsel %vm300, %v224, 0
      %v485 = vsel %vm300, %v225, 0
      %v488 = vsel %vm300, %v226, 0
      %v491 = vsel %vm300, %v227, 0
      %v494 = vsel %vm300, %v228, 0
      %v497 = vsel %vm300, %v229, 0
      %v500 = vsel %vm300, %v230, 0
      %v503 = vsel %vm300, %v231, 0
      %v506 = vsel %vm300, %v232, 0
      %v509 = vsel %vm300, %v233, 0
      %v512 = vsel %vm300, %v234, 0
      %v515 = vsel %vm300, %v235, 0
      %v518 = vsel %vm300, %v236, 0
      %v521 = vsel %vm300, %v237, 0
      %v524 = vsel %vm300, %v238, 0
      %v527 = vsel %vm300, %v239, 0
      %v530 = vsel %vm300, %v240, 0
      %v533 = vsel %vm300, %v241, 0
      %v536 = vsel %vm300, %v242, 0
      %v539 = vsel %vm300, %v243, 0
      %v542 = vsel %vm300, %v244, 0
      %v545 = vsel %vm300, %v245, 0
      %v548 = vsel %vm300, %v246, 0
      %v551 = vsel %vm300, %v247, 0
      %v554 = vsel %vm300, %v248, 0
      %v557 = vsel %vm300, %v249, 0
      %v560 = vsel %vm300, %v250, 0
      %v563 = vsel %vm300, %v251, 0
      %v566 = vsel %vm300, %v252, 0
      %v569 = vsel %vm300, %v253, 0
      %v572 = vsel %vm300, %v254, 0
      %v575 = vsel %vm300, %v255, 0
      %v578 = vsel %vm300, %v256, 0
      %v581 = vsel %vm300, %v257, 0
      %v584 = vsel %vm300, %v258, 0
      %v587 = vsel %vm300, %v259, 0
      %v590 = vsel %vm300, %v260, 0
      %v593 = vsel %vm300, %v261, 0
      %v596 = vsel %vm300, %v262, 0
      %v599 = vsel %vm300, %v263, 0
      %v602 = vsel %vm300, %v264, 0
      %v605 = vsel %vm300, %v265, 0
      %v608 = vsel %vm300, %v266, 0
      %v611 = vsel %vm300, %v267, 0
      %v614 = vsel %vm300, %v268, 0
      %v617 = vsel %vm300, %v269, 0
      %v620 = vsel %vm300, %v270, 0
      %v623 = vsel %vm300, %v271, 0
      %v626 = vsel %vm300, %v272, 0
      %v629 = vsel %vm300, %v273, 0
      %v632 = vsel %vm300, %v274, 0
      %v635 = vsel %vm300, %v275, 0
      %v638 = vsel %vm300, %v276, 0
      %v641 = vsel %vm300, %v277, 0
      %v644 = vsel %vm300, %v278, 0
      %v647 = vsel %vm300, %v279, 0
      %v650 = vsel %vm300, %v280, 0
      %v653 = vsel %vm300, %v281, 0
      %v656 = vsel %vm300, %v282, 0
      %v659 = vsel %vm300, %v283, 0
      %v662 = vsel %vm300, %v284, 0
      %v665 = vsel %vm300, %v285, 0
      %v668 = vsel %vm300, %v286, 0
      %v671 = vsel %vm300, %v287, 0
      %v674 = vsel %vm300, %v288, 0
      %v677 = vsel %vm300, %v289, 0
      %v680 = vsel %vm300, %v290, 0
      %v683 = vsel %vm300, %v291, 0
      %vm685 = vcmask 1044480
      %v687 = vsel %vm685, %v292, 0
      %689 = vmatprep.subr.mxu0 0.0
      %690 = vmatpush1.msra.mxu0 %v687
      %691 = vmatprep.subr.mxu0 0.0
      %692 = vmatpush1.msra.mxu0 0.0
      %693 = vmatprep.subr.mxu0 0.0
      %694 = vmatpush1.msra.mxu0 0.0
      %695 = vmatprep.subr.mxu0 0.0
      %696 = vmatpush1.msra.mxu0 0.0
      %697 = vmatprep.subr.mxu0 0.0
      %698 = vmatpush1.msra.mxu0 0.0
      %699 = vmatprep.subr.mxu0 0.0
      %700 = vmatpush1.msra.mxu0 0.0
      %701 = vmatprep.subr.mxu0 0.0
      %702 = vmatpush1.msra.mxu0 0.0
      %703 = vmatprep.subr.mxu0 0.0
      %704 = vmatpush1.msra.mxu0 0.0
      %705 = vmatprep.subr.mxu0 0.0
      %706 = vmatpush1.msra.mxu0 0.0
      %707 = vmatprep.subr.mxu0 0.0
      %708 = vmatpush1.msra.mxu0 0.0
      %709 = vmatprep.subr.mxu0 0.0
      %710 = vmatpush1.msra.mxu0 0.0
      %711 = vmatprep.subr.mxu0 0.0
      %712 = vmatpush1.msra.mxu0 0.0
      %713 = vmatprep.subr.mxu0 0.0
      %714 = vmatpush1.msra.mxu0 0.0
      %715 = vmatprep.subr.mxu0 0.0
      %716 = vmatpush1.msra.mxu0 0.0
      %717 = vmatprep.subr.mxu0 0.0
      %718 = vmatpush1.msra.mxu0 0.0
      %719 = vmatprep.subr.mxu0 0.0
      %720 = vmatpush1.msra.mxu0 0.0
      %721 = vmatprep.subr.mxu0 0.0
      %722 = vmatpush1.msra.mxu0 0.0
      %723 = vmatprep.subr.mxu0 0.0
      %724 = vmatpush1.msra.mxu0 0.0
      %725 = vmatprep.subr.mxu0 0.0
      %726 = vmatpush1.msra.mxu0 0.0
      %727 = vmatprep.subr.mxu0 0.0
      %728 = vmatpush1.msra.mxu0 0.0
      %729 = vmatprep.subr.mxu0 0.0
      %730 = vmatpush1.msra.mxu0 0.0
      %731 = vmatprep.subr.mxu0 0.0
      %732 = vmatpush1.msra.mxu0 0.0
      %733 = vmatprep.subr.mxu0 0.0
      %734 = vmatpush1.msra.mxu0 0.0
      %735 = vmatprep.subr.mxu0 0.0
      %736 = vmatpush1.msra.mxu0 0.0
      %737 = vmatprep.subr.mxu0 0.0
      %738 = vmatpush1.msra.mxu0 0.0
      %739 = vmatprep.subr.mxu0 0.0
      %740 = vmatpush1.msra.mxu0 0.0
      %741 = vmatprep.subr.mxu0 0.0
      %742 = vmatpush1.msra.mxu0 0.0
      %743 = vmatprep.subr.mxu0 0.0
      %744 = vmatpush1.msra.mxu0 0.0
      %745 = vmatprep.subr.mxu0 0.0
      %746 = vmatpush1.msra.mxu0 0.0
      %747 = vmatprep.subr.mxu0 0.0
      %748 = vmatpush1.msra.mxu0 0.0
      %749 = vmatprep.subr.mxu0 0.0
      %750 = vmatpush1.msra.mxu0 0.0
      %751 = vmatprep.subr.mxu0 0.0
      %752 = vmatpush1.msra.mxu0 0.0
      %753 = vmatprep.mubr.f32.mxu0 0.0
      %754 = vmatmul.mubr.f32.gmra.mrb[0].mxu0 %v302
      %v755 = vpop.f32.mrb[0].mxu0
      %v756 = vadd.f32 %v299, %v755
      %v757 = vpop.f32.mrb[0].mxu0
      %758 = vmatprep.mubr.f32.mxu0 0.0
      %759 = vmatmul.mubr.f32.gmra.mrb[0].mxu0 %v305
      %v760 = vpop.f32.mrb[0].mxu0
      %v761 = vadd.f32 %v299, %v760
      %v762 = vpop.f32.mrb[0].mxu0
      %763 = vmatprep.mubr.f32.mxu0 0.0
      %764 = vmatmul.mubr.f32.gmra.mrb[0].mxu0 %v308
      %v765 = vpop.f32.mrb[0].mxu0
      %v766 = vadd.f32 %v299, %v765
      %v767 = vpop.f32.mrb[0].mxu0
      %768 = vmatprep.mubr.f32.mxu0 0.0
      %769 = vmatmul.mubr.f32.gmra.mrb[0].mxu0 %v311
      %v770 = vpop.f32.mrb[0].mxu0
      %v771 = vadd.f32 %v299, %v770
      %v772 = vpop.f32.mrb[0].mxu0
      %773 = vmatprep.mubr.f32.mxu0 0.0
      %774 = vmatmul.mubr.f32.gmra.mrb[0].mxu0 %v314
      %v775 = vpop.f32.mrb[0].mxu0
      %v776 = vadd.f32 %v299, %v775
      %v777 = vpop.f32.mrb[0].mxu0
      %778 = vmatprep.mubr.f32.mxu0 0.0
      %779 = vmatmul.mubr.f32.gmra.mrb[0].mxu0 %v317
      %v780 = vpop.f32.mrb[0].mxu0
      %v781 = vadd.f32 %v299, %v780
      %v782 = vpop.f32.mrb[0].mxu0
      %783 = vmatprep.mubr.f32.mxu0 0.0
      %784 = vmatmul.mubr.f32.gmra.mrb[0].mxu0 %v320
      %v785 = vpop.f32.mrb[0].mxu0
      %v786 = vadd.f32 %v299, %v785
      %v787 = vpop.f32.mrb[0].mxu0
      %788 = vmatprep.mubr.f32.mxu0 0.0
      %789 = vmatmul.mubr.f32.gmra.mrb[0].mxu0 %v323
      %v790 = vpop.f32.mrb[0].mxu0
      %v791 = vadd.f32 %v299, %v790
      %v792 = vpop.f32.mrb[0].mxu0
      %793 = vmatprep.mubr.f32.mxu0 0.0
      %794 = vmatmul.mubr.f32.gmra.mrb[0].mxu0 %v326
      %v795 = vpop.f32.mrb[0].mxu0
      %v796 = vadd.f32 %v299, %v795
      %v797 = vpop.f32.mrb[0].mxu0
      %798 = vmatprep.mubr.f32.mxu0 0.0
      %799 = vmatmul.mubr.f32.gmra.mrb[0].mxu0 %v329
      %v800 = vpop.f32.mrb[0].mxu0
      %v801 = vadd.f32 %v299, %v800
      %v802 = vpop.f32.mrb[0].mxu0
      %803 = vmatprep.mubr.f32.mxu0 0.0
      %804 = vmatmul.mubr.f32.gmra.mrb[0].mxu0 %v332
      %v805 = vpop.f32.mrb[0].mxu0
      %v806 = vadd.f32 %v299, %v805
      %v807 = vpop.f32.mrb[0].mxu0
      %808 = vmatprep.mubr.f32.mxu0 0.0
      %809 = vmatmul.mubr.f32.gmra.mrb[0].mxu0 %v335
      %v810 = vpop.f32.mrb[0].mxu0
      %v811 = vadd.f32 %v299, %v810
      %v812 = vpop.f32.mrb[0].mxu0
      %813 = vmatprep.mubr.f32.mxu0 0.0
      %814 = vmatmul.mubr.f32.gmra.mrb[0].mxu0 %v338
      %v815 = vpop.f32.mrb[0].mxu0
      %v816 = vadd.f32 %v299, %v815
      %v817 = vpop.f32.mrb[0].mxu0
      %818 = vmatprep.mubr.f32.mxu0 0.0
      %819 = vmatmul.mubr.f32.gmra.mrb[0].mxu0 %v341
      %v820 = vpop.f32.mrb[0].mxu0
      %v821 = vadd.f32 %v299, %v820
      %v822 = vpop.f32.mrb[0].mxu0
      %823 = vmatprep.mubr.f32.mxu0 0.0
      %824 = vmatmul.mubr.f32.gmra.mrb[0].mxu0 %v344
      %v825 = vpop.f32.mrb[0].mxu0
      %v826 = vadd.f32 %v299, %v825
      %v827 = vpop.f32.mrb[0].mxu0
      %828 = vmatprep.mubr.f32.mxu0 0.0
      %829 = vmatmul.mubr.f32.gmra.mrb[0].mxu0 %v347
      %v830 = vpop.f32.mrb[0].mxu0
      %v831 = vadd.f32 %v299, %v830
      %v832 = vpop.f32.mrb[0].mxu0
      %833 = vmatprep.mubr.f32.mxu0 0.0
      %834 = vmatmul.mubr.f32.gmra.mrb[0].mxu0 %v350
      %v835 = vpop.f32.mrb[0].mxu0
      %v836 = vadd.f32 %v299, %v835
      %v837 = vpop.f32.mrb[0].mxu0
      %838 = vmatprep.mubr.f32.mxu0 0.0
      %839 = vmatmul.mubr.f32.gmra.mrb[0].mxu0 %v353
      %v840 = vpop.f32.mrb[0].mxu0
      %v841 = vadd.f32 %v299, %v840
      %v842 = vpop.f32.mrb[0].mxu0
      %843 = vmatprep.mubr.f32.mxu0 0.0
      %844 = vmatmul.mubr.f32.gmra.mrb[0].mxu0 %v356
      %v845 = vpop.f32.mrb[0].mxu0
      %v846 = vadd.f32 %v299, %v845
      %v847 = vpop.f32.mrb[0].mxu0
      %848 = vmatprep.mubr.f32.mxu0 0.0
      %849 = vmatmul.mubr.f32.gmra.mrb[0].mxu0 %v359
      %v850 = vpop.f32.mrb[0].mxu0
      %v851 = vadd.f32 %v299, %v850
      %v852 = vpop.f32.mrb[0].mxu0
      %853 = vmatprep.mubr.f32.mxu0 0.0
      %854 = vmatmul.mubr.f32.gmra.mrb[0].mxu0 %v362
      %v855 = vpop.f32.mrb[0].mxu0
      %v856 = vadd.f32 %v299, %v855
      %v857 = vpop.f32.mrb[0].mxu0
      %858 = vmatprep.mubr.f32.mxu0 0.0
      %859 = vmatmul.mubr.f32.gmra.mrb[0].mxu0 %v365
      %v860 = vpop.f32.mrb[0].mxu0
      %v861 = vadd.f32 %v299, %v860
      %v862 = vpop.f32.mrb[0].mxu0
      %863 = vmatprep.mubr.f32.mxu0 0.0
      %864 = vmatmul.mubr.f32.gmra.mrb[0].mxu0 %v368
      %v865 = vpop.f32.mrb[0].mxu0
      %v866 = vadd.f32 %v299, %v865
      %v867 = vpop.f32.mrb[0].mxu0
      %868 = vmatprep.mubr.f32.mxu0 0.0
      %869 = vmatmul.mubr.f32.gmra.mrb[0].mxu0 %v371
      %v870 = vpop.f32.mrb[0].mxu0
      %v871 = vadd.f32 %v299, %v870
      %v872 = vpop.f32.mrb[0].mxu0
      %873 = vmatprep.mubr.f32.mxu0 0.0
      %874 = vmatmul.mubr.f32.gmra.mrb[0].mxu0 %v374
      %v875 = vpop.f32.mrb[0].mxu0
      %v876 = vadd.f32 %v299, %v875
      %v877 = vpop.f32.mrb[0].mxu0
      %878 = vmatprep.mubr.f32.mxu0 0.0
      %879 = vmatmul.mubr.f32.gmra.mrb[0].mxu0 %v377
      %v880 = vpop.f32.mrb[0].mxu0
      %v881 = vadd.f32 %v299, %v880
      %v882 = vpop.f32.mrb[0].mxu0
      %883 = vmatprep.mubr.f32.mxu0 0.0
      %884 = vmatmul.mubr.f32.gmra.mrb[0].mxu0 %v380
      %v885 = vpop.f32.mrb[0].mxu0
      %v886 = vadd.f32 %v299, %v885
      %v887 = vpop.f32.mrb[0].mxu0
      %888 = vmatprep.mubr.f32.mxu0 0.0
      %889 = vmatmul.mubr.f32.gmra.mrb[0].mxu0 %v383
      %v890 = vpop.f32.mrb[0].mxu0
      %v891 = vadd.f32 %v299, %v890
      %v892 = vpop.f32.mrb[0].mxu0
      %893 = vmatprep.mubr.f32.mxu0 0.0
      %894 = vmatmul.mubr.f32.gmra.mrb[0].mxu0 %v386
      %v895 = vpop.f32.mrb[0].mxu0
      %v896 = vadd.f32 %v299, %v895
      %v897 = vpop.f32.mrb[0].mxu0
      %898 = vmatprep.mubr.f32.mxu0 0.0
      %899 = vmatmul.mubr.f32.gmra.mrb[0].mxu0 %v389
      %v900 = vpop.f32.mrb[0].mxu0
      %v901 = vadd.f32 %v299, %v900
      %v902 = vpop.f32.mrb[0].mxu0
      %903 = vmatprep.mubr.f32.mxu0 0.0
      %904 = vmatmul.mubr.f32.gmra.mrb[0].mxu0 %v392
      %v905 = vpop.f32.mrb[0].mxu0
      %v906 = vadd.f32 %v299, %v905
      %v907 = vpop.f32.mrb[0].mxu0
      %908 = vmatprep.mubr.f32.mxu0 0.0
      %909 = vmatmul.mubr.f32.gmra.mrb[0].mxu0 %v395
      %v910 = vpop.f32.mrb[0].mxu0
      %v911 = vadd.f32 %v299, %v910
      %v912 = vpop.f32.mrb[0].mxu0
      %913 = vmatprep.mubr.f32.mxu0 0.0
      %914 = vmatmul.mubr.f32.gmra.mrb[0].mxu0 %v398
      %v915 = vpop.f32.mrb[0].mxu0
      %v916 = vadd.f32 %v299, %v915
      %v917 = vpop.f32.mrb[0].mxu0
      %918 = vmatprep.mubr.f32.mxu0 0.0
      %919 = vmatmul.mubr.f32.gmra.mrb[0].mxu0 %v401
      %v920 = vpop.f32.mrb[0].mxu0
      %v921 = vadd.f32 %v299, %v920
      %v922 = vpop.f32.mrb[0].mxu0
      %923 = vmatprep.mubr.f32.mxu0 0.0
      %924 = vmatmul.mubr.f32.gmra.mrb[0].mxu0 %v404
      %v925 = vpop.f32.mrb[0].mxu0
      %v926 = vadd.f32 %v299, %v925
      %v927 = vpop.f32.mrb[0].mxu0
      %928 = vmatprep.mubr.f32.mxu0 0.0
      %929 = vmatmul.mubr.f32.gmra.mrb[0].mxu0 %v407
      %v930 = vpop.f32.mrb[0].mxu0
      %v931 = vadd.f32 %v299, %v930
      %v932 = vpop.f32.mrb[0].mxu0
      %933 = vmatprep.mubr.f32.mxu0 0.0
      %934 = vmatmul.mubr.f32.gmra.mrb[0].mxu0 %v410
      %v935 = vpop.f32.mrb[0].mxu0
      %v936 = vadd.f32 %v299, %v935
      %v937 = vpop.f32.mrb[0].mxu0
      %938 = vmatprep.mubr.f32.mxu0 0.0
      %939 = vmatmul.mubr.f32.gmra.mrb[0].mxu0 %v413
      %v940 = vpop.f32.mrb[0].mxu0
      %v941 = vadd.f32 %v299, %v940
      %v942 = vpop.f32.mrb[0].mxu0
      %943 = vmatprep.mubr.f32.mxu0 0.0
      %944 = vmatmul.mubr.f32.gmra.mrb[0].mxu0 %v416
      %v945 = vpop.f32.mrb[0].mxu0
      %v946 = vadd.f32 %v299, %v945
      %v947 = vpop.f32.mrb[0].mxu0
      %948 = vmatprep.mubr.f32.mxu0 0.0
      %949 = vmatmul.mubr.f32.gmra.mrb[0].mxu0 %v419
      %v950 = vpop.f32.mrb[0].mxu0
      %v951 = vadd.f32 %v299, %v950
      %v952 = vpop.f32.mrb[0].mxu0
      %953 = vmatprep.mubr.f32.mxu0 0.0
      %954 = vmatmul.mubr.f32.gmra.mrb[0].mxu0 %v422
      %v955 = vpop.f32.mrb[0].mxu0
      %v956 = vadd.f32 %v299, %v955
      %v957 = vpop.f32.mrb[0].mxu0
      %958 = vmatprep.mubr.f32.mxu0 0.0
      %959 = vmatmul.mubr.f32.gmra.mrb[0].mxu0 %v425
      %v960 = vpop.f32.mrb[0].mxu0
      %v961 = vadd.f32 %v299, %v960
      %v962 = vpop.f32.mrb[0].mxu0
      %963 = vmatprep.mubr.f32.mxu0 0.0
      %964 = vmatmul.mubr.f32.gmra.mrb[0].mxu0 %v428
      %v965 = vpop.f32.mrb[0].mxu0
      %v966 = vadd.f32 %v299, %v965
      %v967 = vpop.f32.mrb[0].mxu0
      %968 = vmatprep.mubr.f32.mxu0 0.0
      %969 = vmatmul.mubr.f32.gmra.mrb[0].mxu0 %v431
      %v970 = vpop.f32.mrb[0].mxu0
      %v971 = vadd.f32 %v299, %v970
      %v972 = vpop.f32.mrb[0].mxu0
      %973 = vmatprep.mubr.f32.mxu0 0.0
      %974 = vmatmul.mubr.f32.gmra.mrb[0].mxu0 %v434
      %v975 = vpop.f32.mrb[0].mxu0
      %v976 = vadd.f32 %v299, %v975
      %v977 = vpop.f32.mrb[0].mxu0
      %978 = vmatprep.mubr.f32.mxu0 0.0
      %979 = vmatmul.mubr.f32.gmra.mrb[0].mxu0 %v437
      %v980 = vpop.f32.mrb[0].mxu0
      %v981 = vadd.f32 %v299, %v980
      %v982 = vpop.f32.mrb[0].mxu0
      %983 = vmatprep.mubr.f32.mxu0 0.0
      %984 = vmatmul.mubr.f32.gmra.mrb[0].mxu0 %v440
      %v985 = vpop.f32.mrb[0].mxu0
      %v986 = vadd.f32 %v299, %v985
      %v987 = vpop.f32.mrb[0].mxu0
      %988 = vmatprep.mubr.f32.mxu0 0.0
      %989 = vmatmul.mubr.f32.gmra.mrb[0].mxu0 %v443
      %v990 = vpop.f32.mrb[0].mxu0
      %v991 = vadd.f32 %v299, %v990
      %v992 = vpop.f32.mrb[0].mxu0
      %993 = vmatprep.mubr.f32.mxu0 0.0
      %994 = vmatmul.mubr.f32.gmra.mrb[0].mxu0 %v446
      %v995 = vpop.f32.mrb[0].mxu0
      %v996 = vadd.f32 %v299, %v995
      %v997 = vpop.f32.mrb[0].mxu0
      %998 = vmatprep.mubr.f32.mxu0 0.0
      %999 = vmatmul.mubr.f32.gmra.mrb[0].mxu0 %v449
      %v1000 = vpop.f32.mrb[0].mxu0
      %v1001 = vadd.f32 %v299, %v1000
      %v1002 = vpop.f32.mrb[0].mxu0
      %1003 = vmatprep.mubr.f32.mxu0 0.0
      %1004 = vmatmul.mubr.f32.gmra.mrb[0].mxu0 %v452
      %v1005 = vpop.f32.mrb[0].mxu0
      %v1006 = vadd.f32 %v299, %v1005
      %v1007 = vpop.f32.mrb[0].mxu0
      %1008 = vmatprep.mubr.f32.mxu0 0.0
      %1009 = vmatmul.mubr.f32.gmra.mrb[0].mxu0 %v455
      %v1010 = vpop.f32.mrb[0].mxu0
      %v1011 = vadd.f32 %v299, %v1010
      %v1012 = vpop.f32.mrb[0].mxu0
      %1013 = vmatprep.mubr.f32.mxu0 0.0
      %1014 = vmatmul.mubr.f32.gmra.mrb[0].mxu0 %v458
      %v1015 = vpop.f32.mrb[0].mxu0
      %v1016 = vadd.f32 %v299, %v1015
      %v1017 = vpop.f32.mrb[0].mxu0
      %1018 = vmatprep.mubr.f32.mxu0 0.0
      %1019 = vmatmul.mubr.f32.gmra.mrb[0].mxu0 %v461
      %v1020 = vpop.f32.mrb[0].mxu0
      %v1021 = vadd.f32 %v299, %v1020
      %v1022 = vpop.f32.mrb[0].mxu0
      %1023 = vmatprep.mubr.f32.mxu0 0.0
      %1024 = vmatmul.mubr.f32.gmra.mrb[0].mxu0 %v464
      %v1025 = vpop.f32.mrb[0].mxu0
      %v1026 = vadd.f32 %v299, %v1025
      %v1027 = vpop.f32.mrb[0].mxu0
      %1028 = vmatprep.mubr.f32.mxu0 0.0
      %1029 = vmatmul.mubr.f32.gmra.mrb[0].mxu0 %v467
      %v1030 = vpop.f32.mrb[0].mxu0
      %v1031 = vadd.f32 %v299, %v1030
      %v1032 = vpop.f32.mrb[0].mxu0
      %1033 = vmatprep.mubr.f32.mxu0 0.0
      %1034 = vmatmul.mubr.f32.gmra.mrb[0].mxu0 %v470
      %v1035 = vpop.f32.mrb[0].mxu0
      %v1036 = vadd.f32 %v299, %v1035
      %v1037 = vpop.f32.mrb[0].mxu0
      %1038 = vmatprep.mubr.f32.mxu0 0.0
      %1039 = vmatmul.mubr.f32.gmra.mrb[0].mxu0 %v473
      %v1040 = vpop.f32.mrb[0].mxu0
      %v1041 = vadd.f32 %v299, %v1040
      %v1042 = vpop.f32.mrb[0].mxu0
      %1043 = vmatprep.mubr.f32.mxu0 0.0
      %1044 = vmatmul.mubr.f32.gmra.mrb[0].mxu0 %v476
      %v1045 = vpop.f32.mrb[0].mxu0
      %v1046 = vadd.f32 %v299, %v1045
      %v1047 = vpop.f32.mrb[0].mxu0
      %1048 = vmatprep.mubr.f32.mxu0 0.0
      %1049 = vmatmul.mubr.f32.gmra.mrb[0].mxu0 %v479
      %v1050 = vpop.f32.mrb[0].mxu0
      %v1051 = vadd.f32 %v299, %v1050
      %v1052 = vpop.f32.mrb[0].mxu0
      %1053 = vmatprep.mubr.f32.mxu0 0.0
      %1054 = vmatmul.mubr.f32.gmra.mrb[0].mxu0 %v482
      %v1055 = vpop.f32.mrb[0].mxu0
      %v1056 = vadd.f32 %v299, %v1055
      %v1057 = vpop.f32.mrb[0].mxu0
      %1058 = vmatprep.mubr.f32.mxu0 0.0
      %1059 = vmatmul.mubr.f32.gmra.mrb[0].mxu0 %v485
      %v1060 = vpop.f32.mrb[0].mxu0
      %v1061 = vadd.f32 %v299, %v1060
      %v1062 = vpop.f32.mrb[0].mxu0
      %1063 = vmatprep.mubr.f32.mxu0 0.0
      %1064 = vmatmul.mubr.f32.gmra.mrb[0].mxu0 %v488
      %v1065 = vpop.f32.mrb[0].mxu0
      %v1066 = vadd.f32 %v299, %v1065
      %v1067 = vpop.f32.mrb[0].mxu0
      %1068 = vmatprep.mubr.f32.mxu0 0.0
      %1069 = vmatmul.mubr.f32.gmra.mrb[0].mxu0 %v491
      %v1070 = vpop.f32.mrb[0].mxu0
      %v1071 = vadd.f32 %v299, %v1070
      %v1072 = vpop.f32.mrb[0].mxu0
      %1073 = vmatprep.mubr.f32.mxu0 0.0
      %1074 = vmatmul.mubr.f32.gmra.mrb[0].mxu0 %v494
      %v1075 = vpop.f32.mrb[0].mxu0
      %v1076 = vadd.f32 %v299, %v1075
      %v1077 = vpop.f32.mrb[0].mxu0
      %1078 = vmatprep.mubr.f32.mxu0 0.0
      %1079 = vmatmul.mubr.f32.gmra.mrb[0].mxu0 %v497
      %v1080 = vpop.f32.mrb[0].mxu0
      %v1081 = vadd.f32 %v299, %v1080
      %v1082 = vpop.f32.mrb[0].mxu0
      %1083 = vmatprep.mubr.f32.mxu0 0.0
      %1084 = vmatmul.mubr.f32.gmra.mrb[0].mxu0 %v500
      %v1085 = vpop.f32.mrb[0].mxu0
      %v1086 = vadd.f32 %v299, %v1085
      %v1087 = vpop.f32.mrb[0].mxu0
      %1088 = vmatprep.mubr.f32.mxu0 0.0
      %1089 = vmatmul.mubr.f32.gmra.mrb[0].mxu0 %v503
      %v1090 = vpop.f32.mrb[0].mxu0
      %v1091 = vadd.f32 %v299, %v1090
      %v1092 = vpop.f32.mrb[0].mxu0
      %1093 = vmatprep.mubr.f32.mxu0 0.0
      %1094 = vmatmul.mubr.f32.gmra.mrb[0].mxu0 %v506
      %v1095 = vpop.f32.mrb[0].mxu0
      %v1096 = vadd.f32 %v299, %v1095
      %v1097 = vpop.f32.mrb[0].mxu0
      %1098 = vmatprep.mubr.f32.mxu0 0.0
      %1099 = vmatmul.mubr.f32.gmra.mrb[0].mxu0 %v509
      %v1100 = vpop.f32.mrb[0].mxu0
      %v1101 = vadd.f32 %v299, %v1100
      %v1102 = vpop.f32.mrb[0].mxu0
      %1103 = vmatprep.mubr.f32.mxu0 0.0
      %1104 = vmatmul.mubr.f32.gmra.mrb[0].mxu0 %v512
      %v1105 = vpop.f32.mrb[0].mxu0
      %v1106 = vadd.f32 %v299, %v1105
      %v1107 = vpop.f32.mrb[0].mxu0
      %1108 = vmatprep.mubr.f32.mxu0 0.0
      %1109 = vmatmul.mubr.f32.gmra.mrb[0].mxu0 %v515
      %v1110 = vpop.f32.mrb[0].mxu0
      %v1111 = vadd.f32 %v299, %v1110
      %v1112 = vpop.f32.mrb[0].mxu0
      %1113 = vmatprep.mubr.f32.mxu0 0.0
      %1114 = vmatmul.mubr.f32.gmra.mrb[0].mxu0 %v518
      %v1115 = vpop.f32.mrb[0].mxu0
      %v1116 = vadd.f32 %v299, %v1115
      %v1117 = vpop.f32.mrb[0].mxu0
      %1118 = vmatprep.mubr.f32.mxu0 0.0
      %1119 = vmatmul.mubr.f32.gmra.mrb[0].mxu0 %v521
      %v1120 = vpop.f32.mrb[0].mxu0
      %v1121 = vadd.f32 %v299, %v1120
      %v1122 = vpop.f32.mrb[0].mxu0
      %1123 = vmatprep.mubr.f32.mxu0 0.0
      %1124 = vmatmul.mubr.f32.gmra.mrb[0].mxu0 %v524
      %v1125 = vpop.f32.mrb[0].mxu0
      %v1126 = vadd.f32 %v299, %v1125
      %v1127 = vpop.f32.mrb[0].mxu0
      %1128 = vmatprep.mubr.f32.mxu0 0.0
      %1129 = vmatmul.mubr.f32.gmra.mrb[0].mxu0 %v527
      %v1130 = vpop.f32.mrb[0].mxu0
      %v1131 = vadd.f32 %v299, %v1130
      %v1132 = vpop.f32.mrb[0].mxu0
      %1133 = vmatprep.mubr.f32.mxu0 0.0
      %1134 = vmatmul.mubr.f32.gmra.mrb[0].mxu0 %v530
      %v1135 = vpop.f32.mrb[0].mxu0
      %v1136 = vadd.f32 %v299, %v1135
      %v1137 = vpop.f32.mrb[0].mxu0
      %1138 = vmatprep.mubr.f32.mxu0 0.0
      %1139 = vmatmul.mubr.f32.gmra.mrb[0].mxu0 %v533
      %v1140 = vpop.f32.mrb[0].mxu0
      %v1141 = vadd.f32 %v299, %v1140
      %v1142 = vpop.f32.mrb[0].mxu0
      %1143 = vmatprep.mubr.f32.mxu0 0.0
      %1144 = vmatmul.mubr.f32.gmra.mrb[0].mxu0 %v536
      %v1145 = vpop.f32.mrb[0].mxu0
      %v1146 = vadd.f32 %v299, %v1145
      %v1147 = vpop.f32.mrb[0].mxu0
      %1148 = vmatprep.mubr.f32.mxu0 0.0
      %1149 = vmatmul.mubr.f32.gmra.mrb[0].mxu0 %v539
      %v1150 = vpop.f32.mrb[0].mxu0
      %v1151 = vadd.f32 %v299, %v1150
      %v1152 = vpop.f32.mrb[0].mxu0
      %1153 = vmatprep.mubr.f32.mxu0 0.0
      %1154 = vmatmul.mubr.f32.gmra.mrb[0].mxu0 %v542
      %v1155 = vpop.f32.mrb[0].mxu0
      %v1156 = vadd.f32 %v299, %v1155
      %v1157 = vpop.f32.mrb[0].mxu0
      %1158 = vmatprep.mubr.f32.mxu0 0.0
      %1159 = vmatmul.mubr.f32.gmra.mrb[0].mxu0 %v545
      %v1160 = vpop.f32.mrb[0].mxu0
      %v1161 = vadd.f32 %v299, %v1160
      %v1162 = vpop.f32.mrb[0].mxu0
      %1163 = vmatprep.mubr.f32.mxu0 0.0
      %1164 = vmatmul.mubr.f32.gmra.mrb[0].mxu0 %v548
      %v1165 = vpop.f32.mrb[0].mxu0
      %v1166 = vadd.f32 %v299, %v1165
      %v1167 = vpop.f32.mrb[0].mxu0
      %1168 = vmatprep.mubr.f32.mxu0 0.0
      %1169 = vmatmul.mubr.f32.gmra.mrb[0].mxu0 %v551
      %v1170 = vpop.f32.mrb[0].mxu0
      %v1171 = vadd.f32 %v299, %v1170
      %v1172 = vpop.f32.mrb[0].mxu0
      %1173 = vmatprep.mubr.f32.mxu0 0.0
      %1174 = vmatmul.mubr.f32.gmra.mrb[0].mxu0 %v554
      %v1175 = vpop.f32.mrb[0].mxu0
      %v1176 = vadd.f32 %v299, %v1175
      %v1177 = vpop.f32.mrb[0].mxu0
      %1178 = vmatprep.mubr.f32.mxu0 0.0
      %1179 = vmatmul.mubr.f32.gmra.mrb[0].mxu0 %v557
      %v1180 = vpop.f32.mrb[0].mxu0
      %v1181 = vadd.f32 %v299, %v1180
      %v1182 = vpop.f32.mrb[0].mxu0
      %1183 = vmatprep.mubr.f32.mxu0 0.0
      %1184 = vmatmul.mubr.f32.gmra.mrb[0].mxu0 %v560
      %v1185 = vpop.f32.mrb[0].mxu0
      %v1186 = vadd.f32 %v299, %v1185
      %v1187 = vpop.f32.mrb[0].mxu0
      %1188 = vmatprep.mubr.f32.mxu0 0.0
      %1189 = vmatmul.mubr.f32.gmra.mrb[0].mxu0 %v563
      %v1190 = vpop.f32.mrb[0].mxu0
      %v1191 = vadd.f32 %v299, %v1190
      %v1192 = vpop.f32.mrb[0].mxu0
      %1193 = vmatprep.mubr.f32.mxu0 0.0
      %1194 = vmatmul.mubr.f32.gmra.mrb[0].mxu0 %v566
      %v1195 = vpop.f32.mrb[0].mxu0
      %v1196 = vadd.f32 %v299, %v1195
      %v1197 = vpop.f32.mrb[0].mxu0
      %1198 = vmatprep.mubr.f32.mxu0 0.0
      %1199 = vmatmul.mubr.f32.gmra.mrb[0].mxu0 %v569
      %v1200 = vpop.f32.mrb[0].mxu0
      %v1201 = vadd.f32 %v299, %v1200
      %v1202 = vpop.f32.mrb[0].mxu0
      %1203 = vmatprep.mubr.f32.mxu0 0.0
      %1204 = vmatmul.mubr.f32.gmra.mrb[0].mxu0 %v572
      %v1205 = vpop.f32.mrb[0].mxu0
      %v1206 = vadd.f32 %v299, %v1205
      %v1207 = vpop.f32.mrb[0].mxu0
      %1208 = vmatprep.mubr.f32.mxu0 0.0
      %1209 = vmatmul.mubr.f32.gmra.mrb[0].mxu0 %v575
      %v1210 = vpop.f32.mrb[0].mxu0
      %v1211 = vadd.f32 %v299, %v1210
      %v1212 = vpop.f32.mrb[0].mxu0
      %1213 = vmatprep.mubr.f32.mxu0 0.0
      %1214 = vmatmul.mubr.f32.gmra.mrb[0].mxu0 %v578
      %v1215 = vpop.f32.mrb[0].mxu0
      %v1216 = vadd.f32 %v299, %v1215
      %v1217 = vpop.f32.mrb[0].mxu0
      %1218 = vmatprep.mubr.f32.mxu0 0.0
      %1219 = vmatmul.mubr.f32.gmra.mrb[0].mxu0 %v581
      %v1220 = vpop.f32.mrb[0].mxu0
      %v1221 = vadd.f32 %v299, %v1220
      %v1222 = vpop.f32.mrb[0].mxu0
      %1223 = vmatprep.mubr.f32.mxu0 0.0
      %1224 = vmatmul.mubr.f32.gmra.mrb[0].mxu0 %v584
      %v1225 = vpop.f32.mrb[0].mxu0
      %v1226 = vadd.f32 %v299, %v1225
      %v1227 = vpop.f32.mrb[0].mxu0
      %1228 = vmatprep.mubr.f32.mxu0 0.0
      %1229 = vmatmul.mubr.f32.gmra.mrb[0].mxu0 %v587
      %v1230 = vpop.f32.mrb[0].mxu0
      %v1231 = vadd.f32 %v299, %v1230
      %v1232 = vpop.f32.mrb[0].mxu0
      %1233 = vmatprep.mubr.f32.mxu0 0.0
      %1234 = vmatmul.mubr.f32.gmra.mrb[0].mxu0 %v590
      %v1235 = vpop.f32.mrb[0].mxu0
      %v1236 = vadd.f32 %v299, %v1235
      %v1237 = vpop.f32.mrb[0].mxu0
      %1238 = vmatprep.mubr.f32.mxu0 0.0
      %1239 = vmatmul.mubr.f32.gmra.mrb[0].mxu0 %v593
      %v1240 = vpop.f32.mrb[0].mxu0
      %v1241 = vadd.f32 %v299, %v1240
      %v1242 = vpop.f32.mrb[0].mxu0
      %1243 = vmatprep.mubr.f32.mxu0 0.0
      %1244 = vmatmul.mubr.f32.gmra.mrb[0].mxu0 %v596
      %v1245 = vpop.f32.mrb[0].mxu0
      %v1246 = vadd.f32 %v299, %v1245
      %v1247 = vpop.f32.mrb[0].mxu0
      %1248 = vmatprep.mubr.f32.mxu0 0.0
      %1249 = vmatmul.mubr.f32.gmra.mrb[0].mxu0 %v599
      %v1250 = vpop.f32.mrb[0].mxu0
      %v1251 = vadd.f32 %v299, %v1250
      %v1252 = vpop.f32.mrb[0].mxu0
      %1253 = vmatprep.mubr.f32.mxu0 0.0
      %1254 = vmatmul.mubr.f32.gmra.mrb[0].mxu0 %v602
      %v1255 = vpop.f32.mrb[0].mxu0
      %v1256 = vadd.f32 %v299, %v1255
      %v1257 = vpop.f32.mrb[0].mxu0
      %1258 = vmatprep.mubr.f32.mxu0 0.0
      %1259 = vmatmul.mubr.f32.gmra.mrb[0].mxu0 %v605
      %v1260 = vpop.f32.mrb[0].mxu0
      %v1261 = vadd.f32 %v299, %v1260
      %v1262 = vpop.f32.mrb[0].mxu0
      %1263 = vmatprep.mubr.f32.mxu0 0.0
      %1264 = vmatmul.mubr.f32.gmra.mrb[0].mxu0 %v608
      %v1265 = vpop.f32.mrb[0].mxu0
      %v1266 = vadd.f32 %v299, %v1265
      %v1267 = vpop.f32.mrb[0].mxu0
      %1268 = vmatprep.mubr.f32.mxu0 0.0
      %1269 = vmatmul.mubr.f32.gmra.mrb[0].mxu0 %v611
      %v1270 = vpop.f32.mrb[0].mxu0
      %v1271 = vadd.f32 %v299, %v1270
      %v1272 = vpop.f32.mrb[0].mxu0
      %1273 = vmatprep.mubr.f32.mxu0 0.0
      %1274 = vmatmul.mubr.f32.gmra.mrb[0].mxu0 %v614
      %v1275 = vpop.f32.mrb[0].mxu0
      %v1276 = vadd.f32 %v299, %v1275
      %v1277 = vpop.f32.mrb[0].mxu0
      %1278 = vmatprep.mubr.f32.mxu0 0.0
      %1279 = vmatmul.mubr.f32.gmra.mrb[0].mxu0 %v617
      %v1280 = vpop.f32.mrb[0].mxu0
      %v1281 = vadd.f32 %v299, %v1280
      %v1282 = vpop.f32.mrb[0].mxu0
      %1283 = vmatprep.mubr.f32.mxu0 0.0
      %1284 = vmatmul.mubr.f32.gmra.mrb[0].mxu0 %v620
      %v1285 = vpop.f32.mrb[0].mxu0
      %v1286 = vadd.f32 %v299, %v1285
      %v1287 = vpop.f32.mrb[0].mxu0
      %1288 = vmatprep.mubr.f32.mxu0 0.0
      %1289 = vmatmul.mubr.f32.gmra.mrb[0].mxu0 %v623
      %v1290 = vpop.f32.mrb[0].mxu0
      %v1291 = vadd.f32 %v299, %v1290
      %v1292 = vpop.f32.mrb[0].mxu0
      %1293 = vmatprep.mubr.f32.mxu0 0.0
      %1294 = vmatmul.mubr.f32.gmra.mrb[0].mxu0 %v626
      %v1295 = vpop.f32.mrb[0].mxu0
      %v1296 = vadd.f32 %v299, %v1295
      %v1297 = vpop.f32.mrb[0].mxu0
      %1298 = vmatprep.mubr.f32.mxu0 0.0
      %1299 = vmatmul.mubr.f32.gmra.mrb[0].mxu0 %v629
      %v1300 = vpop.f32.mrb[0].mxu0
      %v1301 = vadd.f32 %v299, %v1300
      %v1302 = vpop.f32.mrb[0].mxu0
      %1303 = vmatprep.mubr.f32.mxu0 0.0
      %1304 = vmatmul.mubr.f32.gmra.mrb[0].mxu0 %v632
      %v1305 = vpop.f32.mrb[0].mxu0
      %v1306 = vadd.f32 %v299, %v1305
      %v1307 = vpop.f32.mrb[0].mxu0
      %1308 = vmatprep.mubr.f32.mxu0 0.0
      %1309 = vmatmul.mubr.f32.gmra.mrb[0].mxu0 %v635
      %v1310 = vpop.f32.mrb[0].mxu0
      %v1311 = vadd.f32 %v299, %v1310
      %v1312 = vpop.f32.mrb[0].mxu0
      %1313 = vmatprep.mubr.f32.mxu0 0.0
      %1314 = vmatmul.mubr.f32.gmra.mrb[0].mxu0 %v638
      %v1315 = vpop.f32.mrb[0].mxu0
      %v1316 = vadd.f32 %v299, %v1315
      %v1317 = vpop.f32.mrb[0].mxu0
      %1318 = vmatprep.mubr.f32.mxu0 0.0
      %1319 = vmatmul.mubr.f32.gmra.mrb[0].mxu0 %v641
      %v1320 = vpop.f32.mrb[0].mxu0
      %v1321 = vadd.f32 %v299, %v1320
      %v1322 = vpop.f32.mrb[0].mxu0
      %1323 = vmatprep.mubr.f32.mxu0 0.0
      %1324 = vmatmul.mubr.f32.gmra.mrb[0].mxu0 %v644
      %v1325 = vpop.f32.mrb[0].mxu0
      %v1326 = vadd.f32 %v299, %v1325
      %v1327 = vpop.f32.mrb[0].mxu0
      %1328 = vmatprep.mubr.f32.mxu0 0.0
      %1329 = vmatmul.mubr.f32.gmra.mrb[0].mxu0 %v647
      %v1330 = vpop.f32.mrb[0].mxu0
      %v1331 = vadd.f32 %v299, %v1330
      %v1332 = vpop.f32.mrb[0].mxu0
      %1333 = vmatprep.mubr.f32.mxu0 0.0
      %1334 = vmatmul.mubr.f32.gmra.mrb[0].mxu0 %v650
      %v1335 = vpop.f32.mrb[0].mxu0
      %v1336 = vadd.f32 %v299, %v1335
      %v1337 = vpop.f32.mrb[0].mxu0
      %1338 = vmatprep.mubr.f32.mxu0 0.0
      %1339 = vmatmul.mubr.f32.gmra.mrb[0].mxu0 %v653
      %v1340 = vpop.f32.mrb[0].mxu0
      %v1341 = vadd.f32 %v299, %v1340
      %v1342 = vpop.f32.mrb[0].mxu0
      %1343 = vmatprep.mubr.f32.mxu0 0.0
      %1344 = vmatmul.mubr.f32.gmra.mrb[0].mxu0 %v656
      %v1345 = vpop.f32.mrb[0].mxu0
      %v1346 = vadd.f32 %v299, %v1345
      %v1347 = vpop.f32.mrb[0].mxu0
      %1348 = vmatprep.mubr.f32.mxu0 0.0
      %1349 = vmatmul.mubr.f32.gmra.mrb[0].mxu0 %v659
      %v1350 = vpop.f32.mrb[0].mxu0
      %v1351 = vadd.f32 %v299, %v1350
      %v1352 = vpop.f32.mrb[0].mxu0
      %1353 = vmatprep.mubr.f32.mxu0 0.0
      %1354 = vmatmul.mubr.f32.gmra.mrb[0].mxu0 %v662
      %v1355 = vpop.f32.mrb[0].mxu0
      %v1356 = vadd.f32 %v299, %v1355
      %v1357 = vpop.f32.mrb[0].mxu0
      %1358 = vmatprep.mubr.f32.mxu0 0.0
      %1359 = vmatmul.mubr.f32.gmra.mrb[0].mxu0 %v665
      %v1360 = vpop.f32.mrb[0].mxu0
      %v1361 = vadd.f32 %v299, %v1360
      %v1362 = vpop.f32.mrb[0].mxu0
      %1363 = vmatprep.mubr.f32.mxu0 0.0
      %1364 = vmatmul.mubr.f32.gmra.mrb[0].mxu0 %v668
      %v1365 = vpop.f32.mrb[0].mxu0
      %v1366 = vadd.f32 %v299, %v1365
      %v1367 = vpop.f32.mrb[0].mxu0
      %1368 = vmatprep.mubr.f32.mxu0 0.0
      %1369 = vmatmul.mubr.f32.gmra.mrb[0].mxu0 %v671
      %v1370 = vpop.f32.mrb[0].mxu0
      %v1371 = vadd.f32 %v299, %v1370
      %v1372 = vpop.f32.mrb[0].mxu0
      %1373 = vmatprep.mubr.f32.mxu0 0.0
      %1374 = vmatmul.mubr.f32.gmra.mrb[0].mxu0 %v674
      %v1375 = vpop.f32.mrb[0].mxu0
      %v1376 = vadd.f32 %v299, %v1375
      %v1377 = vpop.f32.mrb[0].mxu0
      %1378 = vmatprep.mubr.f32.mxu0 0.0
      %1379 = vmatmul.mubr.f32.gmra.mrb[0].mxu0 %v677
      %v1380 = vpop.f32.mrb[0].mxu0
      %v1381 = vadd.f32 %v299, %v1380
      %v1382 = vpop.f32.mrb[0].mxu0
      %1383 = vmatprep.mubr.f32.mxu0 0.0
      %1384 = vmatmul.mubr.f32.gmra.mrb[0].mxu0 %v680
      %v1385 = vpop.f32.mrb[0].mxu0
      %v1386 = vadd.f32 %v299, %v1385
      %v1387 = vpop.f32.mrb[0].mxu0
      %1388 = vmatprep.mubr.f32.mxu0 0.0
      %1389 = vmatmul.mubr.f32.gmra.mrb[0].mxu0 %v683
      %v1390 = vpop.f32.mrb[0].mxu0
      %v1391 = vadd.f32 %v299, %v1390
      %v1392 = vpop.f32.mrb[0].mxu0
      %1393 = vdwg.mxu0
      %v1394 = vmax.f32 %v756, 0.0
      %v1395 = vmax.f32 %v761, 0.0
      %v1396 = vmax.f32 %v766, 0.0
      %v1397 = vmax.f32 %v771, 0.0
      %v1398 = vmax.f32 %v776, 0.0
      %v1399 = vmax.f32 %v781, 0.0
      %v1400 = vmax.f32 %v786, 0.0
      %v1401 = vmax.f32 %v791, 0.0
      %v1402 = vmax.f32 %v796, 0.0
      %v1403 = vmax.f32 %v801, 0.0
      %v1404 = vmax.f32 %v806, 0.0
      %v1405 = vmax.f32 %v811, 0.0
      %v1406 = vmax.f32 %v816, 0.0
      %v1407 = vmax.f32 %v821, 0.0
      %v1408 = vmax.f32 %v826, 0.0
      %v1409 = vmax.f32 %v831, 0.0
      %v1410 = vmax.f32 %v836, 0.0
      %v1411 = vmax.f32 %v841, 0.0
      %v1412 = vmax.f32 %v846, 0.0
      %v1413 = vmax.f32 %v851, 0.0
      %v1414 = vmax.f32 %v856, 0.0
      %v1415 = vmax.f32 %v861, 0.0
      %v1416 = vmax.f32 %v866, 0.0
      %v1417 = vmax.f32 %v871, 0.0
      %v1418 = vmax.f32 %v876, 0.0
      %v1419 = vmax.f32 %v881, 0.0
      %v1420 = vmax.f32 %v886, 0.0
      %v1421 = vmax.f32 %v891, 0.0
      %v1422 = vmax.f32 %v896, 0.0
      %v1423 = vmax.f32 %v901, 0.0
      %v1424 = vmax.f32 %v906, 0.0
      %v1425 = vmax.f32 %v911, 0.0
      %v1426 = vmax.f32 %v916, 0.0
      %v1427 = vmax.f32 %v921, 0.0
      %v1428 = vmax.f32 %v926, 0.0
      %v1429 = vmax.f32 %v931, 0.0
      %v1430 = vmax.f32 %v936, 0.0
      %v1431 = vmax.f32 %v941, 0.0
      %v1432 = vmax.f32 %v946, 0.0
      %v1433 = vmax.f32 %v951, 0.0
      %v1434 = vmax.f32 %v956, 0.0
      %v1435 = vmax.f32 %v961, 0.0
      %v1436 = vmax.f32 %v966, 0.0
      %v1437 = vmax.f32 %v971, 0.0
      %v1438 = vmax.f32 %v976, 0.0
      %v1439 = vmax.f32 %v981, 0.0
      %v1440 = vmax.f32 %v986, 0.0
      %v1441 = vmax.f32 %v991, 0.0
      %v1442 = vmax.f32 %v996, 0.0
      %v1443 = vmax.f32 %v1001, 0.0
      %v1444 = vmax.f32 %v1006, 0.0
      %v1445 = vmax.f32 %v1011, 0.0
      %v1446 = vmax.f32 %v1016, 0.0
      %v1447 = vmax.f32 %v1021, 0.0
      %v1448 = vmax.f32 %v1026, 0.0
      %v1449 = vmax.f32 %v1031, 0.0
      %v1450 = vmax.f32 %v1036, 0.0
      %v1451 = vmax.f32 %v1041, 0.0
      %v1452 = vmax.f32 %v1046, 0.0
      %v1453 = vmax.f32 %v1051, 0.0
      %v1454 = vmax.f32 %v1056, 0.0
      %v1455 = vmax.f32 %v1061, 0.0
      %v1456 = vmax.f32 %v1066, 0.0
      %v1457 = vmax.f32 %v1071, 0.0
      %v1458 = vmax.f32 %v1076, 0.0
      %v1459 = vmax.f32 %v1081, 0.0
      %v1460 = vmax.f32 %v1086, 0.0
      %v1461 = vmax.f32 %v1091, 0.0
      %v1462 = vmax.f32 %v1096, 0.0
      %v1463 = vmax.f32 %v1101, 0.0
      %v1464 = vmax.f32 %v1106, 0.0
      %v1465 = vmax.f32 %v1111, 0.0
      %v1466 = vmax.f32 %v1116, 0.0
      %v1467 = vmax.f32 %v1121, 0.0
      %v1468 = vmax.f32 %v1126, 0.0
      %v1469 = vmax.f32 %v1131, 0.0
      %v1470 = vmax.f32 %v1136, 0.0
      %v1471 = vmax.f32 %v1141, 0.0
      %v1472 = vmax.f32 %v1146, 0.0
      %v1473 = vmax.f32 %v1151, 0.0
      %v1474 = vmax.f32 %v1156, 0.0
      %v1475 = vmax.f32 %v1161, 0.0
      %v1476 = vmax.f32 %v1166, 0.0
      %v1477 = vmax.f32 %v1171, 0.0
      %v1478 = vmax.f32 %v1176, 0.0
      %v1479 = vmax.f32 %v1181, 0.0
      %v1480 = vmax.f32 %v1186, 0.0
      %v1481 = vmax.f32 %v1191, 0.0
      %v1482 = vmax.f32 %v1196, 0.0
      %v1483 = vmax.f32 %v1201, 0.0
      %v1484 = vmax.f32 %v1206, 0.0
      %v1485 = vmax.f32 %v1211, 0.0
      %v1486 = vmax.f32 %v1216, 0.0
      %v1487 = vmax.f32 %v1221, 0.0
      %v1488 = vmax.f32 %v1226, 0.0
      %v1489 = vmax.f32 %v1231, 0.0
      %v1490 = vmax.f32 %v1236, 0.0
      %v1491 = vmax.f32 %v1241, 0.0
      %v1492 = vmax.f32 %v1246, 0.0
      %v1493 = vmax.f32 %v1251, 0.0
      %v1494 = vmax.f32 %v1256, 0.0
      %v1495 = vmax.f32 %v1261, 0.0
      %v1496 = vmax.f32 %v1266, 0.0
      %v1497 = vmax.f32 %v1271, 0.0
      %v1498 = vmax.f32 %v1276, 0.0
      %v1499 = vmax.f32 %v1281, 0.0
      %v1500 = vmax.f32 %v1286, 0.0
      %v1501 = vmax.f32 %v1291, 0.0
      %v1502 = vmax.f32 %v1296, 0.0
      %v1503 = vmax.f32 %v1301, 0.0
      %v1504 = vmax.f32 %v1306, 0.0
      %v1505 = vmax.f32 %v1311, 0.0
      %v1506 = vmax.f32 %v1316, 0.0
      %v1507 = vmax.f32 %v1321, 0.0
      %v1508 = vmax.f32 %v1326, 0.0
      %v1509 = vmax.f32 %v1331, 0.0
      %v1510 = vmax.f32 %v1336, 0.0
      %v1511 = vmax.f32 %v1341, 0.0
      %v1512 = vmax.f32 %v1346, 0.0
      %v1513 = vmax.f32 %v1351, 0.0
      %v1514 = vmax.f32 %v1356, 0.0
      %v1515 = vmax.f32 %v1361, 0.0
      %v1516 = vmax.f32 %v1366, 0.0
      %v1517 = vmax.f32 %v1371, 0.0
      %v1518 = vmax.f32 %v1376, 0.0
      %v1519 = vmax.f32 %v1381, 0.0
      %v1520 = vmax.f32 %v1386, 0.0
      %v1521 = vmax.f32 %v1391, 0.0
      %v1522 = vlaneseq
      %v1523 = vshrl.u32 %v1522, 7
      %v1524 = vsub.s32 0, %v1523
      %v1525 = vrot.slane %v294, %v1524
      %v1526 = vmul.f32 %v1394, %v1525
      %v1527 = vmul.f32 %v1395, %v1525
      %v1528 = vmul.f32 %v1396, %v1525
      %v1529 = vmul.f32 %v1397, %v1525
      %v1530 = vmul.f32 %v1398, %v1525
      %v1531 = vmul.f32 %v1399, %v1525
      %v1532 = vmul.f32 %v1400, %v1525
      %v1533 = vmul.f32 %v1401, %v1525
      %v1534 = vmul.f32 %v1402, %v1525
      %v1535 = vmul.f32 %v1403, %v1525
      %v1536 = vmul.f32 %v1404, %v1525
      %v1537 = vmul.f32 %v1405, %v1525
      %v1538 = vmul.f32 %v1406, %v1525
      %v1539 = vmul.f32 %v1407, %v1525
      %v1540 = vmul.f32 %v1408, %v1525
      %v1541 = vmul.f32 %v1409, %v1525
      %v1542 = vmul.f32 %v1410, %v1525
      %v1543 = vmul.f32 %v1411, %v1525
      %v1544 = vmul.f32 %v1412, %v1525
      %v1545 = vmul.f32 %v1413, %v1525
      %v1546 = vmul.f32 %v1414, %v1525
      %v1547 = vmul.f32 %v1415, %v1525
      %v1548 = vmul.f32 %v1416, %v1525
      %v1549 = vmul.f32 %v1417, %v1525
      %v1550 = vmul.f32 %v1418, %v1525
      %v1551 = vmul.f32 %v1419, %v1525
      %v1552 = vmul.f32 %v1420, %v1525
      %v1553 = vmul.f32 %v1421, %v1525
      %v1554 = vmul.f32 %v1422, %v1525
      %v1555 = vmul.f32 %v1423, %v1525
      %v1556 = vmul.f32 %v1424, %v1525
      %v1557 = vmul.f32 %v1425, %v1525
      %v1558 = vmul.f32 %v1426, %v1525
      %v1559 = vmul.f32 %v1427, %v1525
      %v1560 = vmul.f32 %v1428, %v1525
      %v1561 = vmul.f32 %v1429, %v1525
      %v1562 = vmul.f32 %v1430, %v1525
      %v1563 = vmul.f32 %v1431, %v1525
      %v1564 = vmul.f32 %v1432, %v1525
      %v1565 = vmul.f32 %v1433, %v1525
      %v1566 = vmul.f32 %v1434, %v1525
      %v1567 = vmul.f32 %v1435, %v1525
      %v1568 = vmul.f32 %v1436, %v1525
      %v1569 = vmul.f32 %v1437, %v1525
      %v1570 = vmul.f32 %v1438, %v1525
      %v1571 = vmul.f32 %v1439, %v1525
      %v1572 = vmul.f32 %v1440, %v1525
      %v1573 = vmul.f32 %v1441, %v1525
      %v1574 = vmul.f32 %v1442, %v1525
      %v1575 = vmul.f32 %v1443, %v1525
      %v1576 = vmul.f32 %v1444, %v1525
      %v1577 = vmul.f32 %v1445, %v1525
      %v1578 = vmul.f32 %v1446, %v1525
      %v1579 = vmul.f32 %v1447, %v1525
      %v1580 = vmul.f32 %v1448, %v1525
      %v1581 = vmul.f32 %v1449, %v1525
      %v1582 = vmul.f32 %v1450, %v1525
      %v1583 = vmul.f32 %v1451, %v1525
      %v1584 = vmul.f32 %v1452, %v1525
      %v1585 = vmul.f32 %v1453, %v1525
      %v1586 = vmul.f32 %v1454, %v1525
      %v1587 = vmul.f32 %v1455, %v1525
      %v1588 = vmul.f32 %v1456, %v1525
      %v1589 = vmul.f32 %v1457, %v1525
      %v1590 = vmul.f32 %v1458, %v1525
      %v1591 = vmul.f32 %v1459, %v1525
      %v1592 = vmul.f32 %v1460, %v1525
      %v1593 = vmul.f32 %v1461, %v1525
      %v1594 = vmul.f32 %v1462, %v1525
      %v1595 = vmul.f32 %v1463, %v1525
      %v1596 = vmul.f32 %v1464, %v1525
      %v1597 = vmul.f32 %v1465, %v1525
      %v1598 = vmul.f32 %v1466, %v1525
      %v1599 = vmul.f32 %v1467, %v1525
      %v1600 = vmul.f32 %v1468, %v1525
      %v1601 = vmul.f32 %v1469, %v1525
      %v1602 = vmul.f32 %v1470, %v1525
      %v1603 = vmul.f32 %v1471, %v1525
      %v1604 = vmul.f32 %v1472, %v1525
      %v1605 = vmul.f32 %v1473, %v1525
      %v1606 = vmul.f32 %v1474, %v1525
      %v1607 = vmul.f32 %v1475, %v1525
      %v1608 = vmul.f32 %v1476, %v1525
      %v1609 = vmul.f32 %v1477, %v1525
      %v1610 = vmul.f32 %v1478, %v1525
      %v1611 = vmul.f32 %v1479, %v1525
      %v1612 = vmul.f32 %v1480, %v1525
      %v1613 = vmul.f32 %v1481, %v1525
      %v1614 = vmul.f32 %v1482, %v1525
      %v1615 = vmul.f32 %v1483, %v1525
      %v1616 = vmul.f32 %v1484, %v1525
      %v1617 = vmul.f32 %v1485, %v1525
      %v1618 = vmul.f32 %v1486, %v1525
      %v1619 = vmul.f32 %v1487, %v1525
      %v1620 = vmul.f32 %v1488, %v1525
      %v1621 = vmul.f32 %v1489, %v1525
      %v1622 = vmul.f32 %v1490, %v1525
      %v1623 = vmul.f32 %v1491, %v1525
      %v1624 = vmul.f32 %v1492, %v1525
      %v1625 = vmul.f32 %v1493, %v1525
      %v1626 = vmul.f32 %v1494, %v1525
      %v1627 = vmul.f32 %v1495, %v1525
      %v1628 = vmul.f32 %v1496, %v1525
      %v1629 = vmul.f32 %v1497, %v1525
      %v1630 = vmul.f32 %v1498, %v1525
      %v1631 = vmul.f32 %v1499, %v1525
      %v1632 = vmul.f32 %v1500, %v1525
      %v1633 = vmul.f32 %v1501, %v1525
      %v1634 = vmul.f32 %v1502, %v1525
      %v1635 = vmul.f32 %v1503, %v1525
      %v1636 = vmul.f32 %v1504, %v1525
      %v1637 = vmul.f32 %v1505, %v1525
      %v1638 = vmul.f32 %v1506, %v1525
      %v1639 = vmul.f32 %v1507, %v1525
      %v1640 = vmul.f32 %v1508, %v1525
      %v1641 = vmul.f32 %v1509, %v1525
      %v1642 = vmul.f32 %v1510, %v1525
      %v1643 = vmul.f32 %v1511, %v1525
      %v1644 = vmul.f32 %v1512, %v1525
      %v1645 = vmul.f32 %v1513, %v1525
      %v1646 = vmul.f32 %v1514, %v1525
      %v1647 = vmul.f32 %v1515, %v1525
      %v1648 = vmul.f32 %v1516, %v1525
      %v1649 = vmul.f32 %v1517, %v1525
      %v1650 = vmul.f32 %v1518, %v1525
      %v1651 = vmul.f32 %v1519, %v1525
      %v1652 = vmul.f32 %v1520, %v1525
      %v1653 = vmul.f32 %v1521, %v1525
      %vm1654 = vcmask 523264
      %v1655 = vsel %vm1654, %v1526, 0.0
      %1656 = vadd.xlane.f32.xlu0 %v1655
      %v1657 = vpop.xlane.xlu0 %1656
      %v1658 = vsel %vm1654, %v1527, 0.0
      %1659 = vadd.xlane.f32.xlu0 %v1658
      %v1660 = vpop.xlane.xlu0 %1659
      %v1661 = vsel %vm1654, %v1528, 0.0
      %1662 = vadd.xlane.f32.xlu0 %v1661
      %v1663 = vpop.xlane.xlu0 %1662
      %v1664 = vsel %vm1654, %v1529, 0.0
      %1665 = vadd.xlane.f32.xlu0 %v1664
      %v1666 = vpop.xlane.xlu0 %1665
      %v1667 = vsel %vm1654, %v1530, 0.0
      %1668 = vadd.xlane.f32.xlu0 %v1667
      %v1669 = vpop.xlane.xlu0 %1668
      %v1670 = vsel %vm1654, %v1531, 0.0
      %1671 = vadd.xlane.f32.xlu0 %v1670
      %v1672 = vpop.xlane.xlu0 %1671
      %v1673 = vsel %vm1654, %v1532, 0.0
      %1674 = vadd.xlane.f32.xlu0 %v1673
      %v1675 = vpop.xlane.xlu0 %1674
      %v1676 = vsel %vm1654, %v1533, 0.0
      %1677 = vadd.xlane.f32.xlu0 %v1676
      %v1678 = vpop.xlane.xlu0 %1677
      %v1679 = vsel %vm1654, %v1534, 0.0
      %1680 = vadd.xlane.f32.xlu0 %v1679
      %v1681 = vpop.xlane.xlu0 %1680
      %v1682 = vsel %vm1654, %v1535, 0.0
      %1683 = vadd.xlane.f32.xlu0 %v1682
      %v1684 = vpop.xlane.xlu0 %1683
      %v1685 = vsel %vm1654, %v1536, 0.0
      %1686 = vadd.xlane.f32.xlu0 %v1685
      %v1687 = vpop.xlane.xlu0 %1686
      %v1688 = vsel %vm1654, %v1537, 0.0
      %1689 = vadd.xlane.f32.xlu0 %v1688
      %v1690 = vpop.xlane.xlu0 %1689
      %v1691 = vsel %vm1654, %v1538, 0.0
      %1692 = vadd.xlane.f32.xlu0 %v1691
      %v1693 = vpop.xlane.xlu0 %1692
      %v1694 = vsel %vm1654, %v1539, 0.0
      %1695 = vadd.xlane.f32.xlu0 %v1694
      %v1696 = vpop.xlane.xlu0 %1695
      %v1697 = vsel %vm1654, %v1540, 0.0
      %1698 = vadd.xlane.f32.xlu0 %v1697
      %v1699 = vpop.xlane.xlu0 %1698
      %v1700 = vsel %vm1654, %v1541, 0.0
      %1701 = vadd.xlane.f32.xlu0 %v1700
      %v1702 = vpop.xlane.xlu0 %1701
      %v1703 = vsel %vm1654, %v1542, 0.0
      %1704 = vadd.xlane.f32.xlu0 %v1703
      %v1705 = vpop.xlane.xlu0 %1704
      %v1706 = vsel %vm1654, %v1543, 0.0
      %1707 = vadd.xlane.f32.xlu0 %v1706
      %v1708 = vpop.xlane.xlu0 %1707
      %v1709 = vsel %vm1654, %v1544, 0.0
      %1710 = vadd.xlane.f32.xlu0 %v1709
      %v1711 = vpop.xlane.xlu0 %1710
      %v1712 = vsel %vm1654, %v1545, 0.0
      %1713 = vadd.xlane.f32.xlu0 %v1712
      %v1714 = vpop.xlane.xlu0 %1713
      %v1715 = vsel %vm1654, %v1546, 0.0
      %1716 = vadd.xlane.f32.xlu0 %v1715
      %v1717 = vpop.xlane.xlu0 %1716
      %v1718 = vsel %vm1654, %v1547, 0.0
      %1719 = vadd.xlane.f32.xlu0 %v1718
      %v1720 = vpop.xlane.xlu0 %1719
      %v1721 = vsel %vm1654, %v1548, 0.0
      %1722 = vadd.xlane.f32.xlu0 %v1721
      %v1723 = vpop.xlane.xlu0 %1722
      %v1724 = vsel %vm1654, %v1549, 0.0
      %1725 = vadd.xlane.f32.xlu0 %v1724
      %v1726 = vpop.xlane.xlu0 %1725
      %v1727 = vsel %vm1654, %v1550, 0.0
      %1728 = vadd.xlane.f32.xlu0 %v1727
      %v1729 = vpop.xlane.xlu0 %1728
      %v1730 = vsel %vm1654, %v1551, 0.0
      %1731 = vadd.xlane.f32.xlu0 %v1730
      %v1732 = vpop.xlane.xlu0 %1731
      %v1733 = vsel %vm1654, %v1552, 0.0
      %1734 = vadd.xlane.f32.xlu0 %v1733
      %v1735 = vpop.xlane.xlu0 %1734
      %v1736 = vsel %vm1654, %v1553, 0.0
      %1737 = vadd.xlane.f32.xlu0 %v1736
      %v1738 = vpop.xlane.xlu0 %1737
      %v1739 = vsel %vm1654, %v1554, 0.0
      %1740 = vadd.xlane.f32.xlu0 %v1739
      %v1741 = vpop.xlane.xlu0 %1740
      %v1742 = vsel %vm1654, %v1555, 0.0
      %1743 = vadd.xlane.f32.xlu0 %v1742
      %v1744 = vpop.xlane.xlu0 %1743
      %v1745 = vsel %vm1654, %v1556, 0.0
      %1746 = vadd.xlane.f32.xlu0 %v1745
      %v1747 = vpop.xlane.xlu0 %1746
      %v1748 = vsel %vm1654, %v1557, 0.0
      %1749 = vadd.xlane.f32.xlu0 %v1748
      %v1750 = vpop.xlane.xlu0 %1749
      %v1751 = vsel %vm1654, %v1558, 0.0
      %1752 = vadd.xlane.f32.xlu0 %v1751
      %v1753 = vpop.xlane.xlu0 %1752
      %v1754 = vsel %vm1654, %v1559, 0.0
      %1755 = vadd.xlane.f32.xlu0 %v1754
      %v1756 = vpop.xlane.xlu0 %1755
      %v1757 = vsel %vm1654, %v1560, 0.0
      %1758 = vadd.xlane.f32.xlu0 %v1757
      %v1759 = vpop.xlane.xlu0 %1758
      %v1760 = vsel %vm1654, %v1561, 0.0
      %1761 = vadd.xlane.f32.xlu0 %v1760
      %v1762 = vpop.xlane.xlu0 %1761
      %v1763 = vsel %vm1654, %v1562, 0.0
      %1764 = vadd.xlane.f32.xlu0 %v1763
      %v1765 = vpop.xlane.xlu0 %1764
      %v1766 = vsel %vm1654, %v1563, 0.0
      %1767 = vadd.xlane.f32.xlu0 %v1766
      %v1768 = vpop.xlane.xlu0 %1767
      %v1769 = vsel %vm1654, %v1564, 0.0
      %1770 = vadd.xlane.f32.xlu0 %v1769
      %v1771 = vpop.xlane.xlu0 %1770
      %v1772 = vsel %vm1654, %v1565, 0.0
      %1773 = vadd.xlane.f32.xlu0 %v1772
      %v1774 = vpop.xlane.xlu0 %1773
      %v1775 = vsel %vm1654, %v1566, 0.0
      %1776 = vadd.xlane.f32.xlu0 %v1775
      %v1777 = vpop.xlane.xlu0 %1776
      %v1778 = vsel %vm1654, %v1567, 0.0
      %1779 = vadd.xlane.f32.xlu0 %v1778
      %v1780 = vpop.xlane.xlu0 %1779
      %v1781 = vsel %vm1654, %v1568, 0.0
      %1782 = vadd.xlane.f32.xlu0 %v1781
      %v1783 = vpop.xlane.xlu0 %1782
      %v1784 = vsel %vm1654, %v1569, 0.0
      %1785 = vadd.xlane.f32.xlu0 %v1784
      %v1786 = vpop.xlane.xlu0 %1785
      %v1787 = vsel %vm1654, %v1570, 0.0
      %1788 = vadd.xlane.f32.xlu0 %v1787
      %v1789 = vpop.xlane.xlu0 %1788
      %v1790 = vsel %vm1654, %v1571, 0.0
      %1791 = vadd.xlane.f32.xlu0 %v1790
      %v1792 = vpop.xlane.xlu0 %1791
      %v1793 = vsel %vm1654, %v1572, 0.0
      %1794 = vadd.xlane.f32.xlu0 %v1793
      %v1795 = vpop.xlane.xlu0 %1794
      %v1796 = vsel %vm1654, %v1573, 0.0
      %1797 = vadd.xlane.f32.xlu0 %v1796
      %v1798 = vpop.xlane.xlu0 %1797
      %v1799 = vsel %vm1654, %v1574, 0.0
      %1800 = vadd.xlane.f32.xlu0 %v1799
      %v1801 = vpop.xlane.xlu0 %1800
      %v1802 = vsel %vm1654, %v1575, 0.0
      %1803 = vadd.xlane.f32.xlu0 %v1802
      %v1804 = vpop.xlane.xlu0 %1803
      %v1805 = vsel %vm1654, %v1576, 0.0
      %1806 = vadd.xlane.f32.xlu0 %v1805
      %v1807 = vpop.xlane.xlu0 %1806
      %v1808 = vsel %vm1654, %v1577, 0.0
      %1809 = vadd.xlane.f32.xlu0 %v1808
      %v1810 = vpop.xlane.xlu0 %1809
      %v1811 = vsel %vm1654, %v1578, 0.0
      %1812 = vadd.xlane.f32.xlu0 %v1811
      %v1813 = vpop.xlane.xlu0 %1812
      %v1814 = vsel %vm1654, %v1579, 0.0
      %1815 = vadd.xlane.f32.xlu0 %v1814
      %v1816 = vpop.xlane.xlu0 %1815
      %v1817 = vsel %vm1654, %v1580, 0.0
      %1818 = vadd.xlane.f32.xlu0 %v1817
      %v1819 = vpop.xlane.xlu0 %1818
      %v1820 = vsel %vm1654, %v1581, 0.0
      %1821 = vadd.xlane.f32.xlu0 %v1820
      %v1822 = vpop.xlane.xlu0 %1821
      %v1823 = vsel %vm1654, %v1582, 0.0
      %1824 = vadd.xlane.f32.xlu0 %v1823
      %v1825 = vpop.xlane.xlu0 %1824
      %v1826 = vsel %vm1654, %v1583, 0.0
      %1827 = vadd.xlane.f32.xlu0 %v1826
      %v1828 = vpop.xlane.xlu0 %1827
      %v1829 = vsel %vm1654, %v1584, 0.0
      %1830 = vadd.xlane.f32.xlu0 %v1829
      %v1831 = vpop.xlane.xlu0 %1830
      %v1832 = vsel %vm1654, %v1585, 0.0
      %1833 = vadd.xlane.f32.xlu0 %v1832
      %v1834 = vpop.xlane.xlu0 %1833
      %v1835 = vsel %vm1654, %v1586, 0.0
      %1836 = vadd.xlane.f32.xlu0 %v1835
      %v1837 = vpop.xlane.xlu0 %1836
      %v1838 = vsel %vm1654, %v1587, 0.0
      %1839 = vadd.xlane.f32.xlu0 %v1838
      %v1840 = vpop.xlane.xlu0 %1839
      %v1841 = vsel %vm1654, %v1588, 0.0
      %1842 = vadd.xlane.f32.xlu0 %v1841
      %v1843 = vpop.xlane.xlu0 %1842
      %v1844 = vsel %vm1654, %v1589, 0.0
      %1845 = vadd.xlane.f32.xlu0 %v1844
      %v1846 = vpop.xlane.xlu0 %1845
      %v1847 = vsel %vm1654, %v1590, 0.0
      %1848 = vadd.xlane.f32.xlu0 %v1847
      %v1849 = vpop.xlane.xlu0 %1848
      %v1850 = vsel %vm1654, %v1591, 0.0
      %1851 = vadd.xlane.f32.xlu0 %v1850
      %v1852 = vpop.xlane.xlu0 %1851
      %v1853 = vsel %vm1654, %v1592, 0.0
      %1854 = vadd.xlane.f32.xlu0 %v1853
      %v1855 = vpop.xlane.xlu0 %1854
      %v1856 = vsel %vm1654, %v1593, 0.0
      %1857 = vadd.xlane.f32.xlu0 %v1856
      %v1858 = vpop.xlane.xlu0 %1857
      %v1859 = vsel %vm1654, %v1594, 0.0
      %1860 = vadd.xlane.f32.xlu0 %v1859
      %v1861 = vpop.xlane.xlu0 %1860
      %v1862 = vsel %vm1654, %v1595, 0.0
      %1863 = vadd.xlane.f32.xlu0 %v1862
      %v1864 = vpop.xlane.xlu0 %1863
      %v1865 = vsel %vm1654, %v1596, 0.0
      %1866 = vadd.xlane.f32.xlu0 %v1865
      %v1867 = vpop.xlane.xlu0 %1866
      %v1868 = vsel %vm1654, %v1597, 0.0
      %1869 = vadd.xlane.f32.xlu0 %v1868
      %v1870 = vpop.xlane.xlu0 %1869
      %v1871 = vsel %vm1654, %v1598, 0.0
      %1872 = vadd.xlane.f32.xlu0 %v1871
      %v1873 = vpop.xlane.xlu0 %1872
      %v1874 = vsel %vm1654, %v1599, 0.0
      %1875 = vadd.xlane.f32.xlu0 %v1874
      %v1876 = vpop.xlane.xlu0 %1875
      %v1877 = vsel %vm1654, %v1600, 0.0
      %1878 = vadd.xlane.f32.xlu0 %v1877
      %v1879 = vpop.xlane.xlu0 %1878
      %v1880 = vsel %vm1654, %v1601, 0.0
      %1881 = vadd.xlane.f32.xlu0 %v1880
      %v1882 = vpop.xlane.xlu0 %1881
      %v1883 = vsel %vm1654, %v1602, 0.0
      %1884 = vadd.xlane.f32.xlu0 %v1883
      %v1885 = vpop.xlane.xlu0 %1884
      %v1886 = vsel %vm1654, %v1603, 0.0
      %1887 = vadd.xlane.f32.xlu0 %v1886
      %v1888 = vpop.xlane.xlu0 %1887
      %v1889 = vsel %vm1654, %v1604, 0.0
      %1890 = vadd.xlane.f32.xlu0 %v1889
      %v1891 = vpop.xlane.xlu0 %1890
      %v1892 = vsel %vm1654, %v1605, 0.0
      %1893 = vadd.xlane.f32.xlu0 %v1892
      %v1894 = vpop.xlane.xlu0 %1893
      %v1895 = vsel %vm1654, %v1606, 0.0
      %1896 = vadd.xlane.f32.xlu0 %v1895
      %v1897 = vpop.xlane.xlu0 %1896
      %v1898 = vsel %vm1654, %v1607, 0.0
      %1899 = vadd.xlane.f32.xlu0 %v1898
      %v1900 = vpop.xlane.xlu0 %1899
      %v1901 = vsel %vm1654, %v1608, 0.0
      %1902 = vadd.xlane.f32.xlu0 %v1901
      %v1903 = vpop.xlane.xlu0 %1902
      %v1904 = vsel %vm1654, %v1609, 0.0
      %1905 = vadd.xlane.f32.xlu0 %v1904
      %v1906 = vpop.xlane.xlu0 %1905
      %v1907 = vsel %vm1654, %v1610, 0.0
      %1908 = vadd.xlane.f32.xlu0 %v1907
      %v1909 = vpop.xlane.xlu0 %1908
      %v1910 = vsel %vm1654, %v1611, 0.0
      %1911 = vadd.xlane.f32.xlu0 %v1910
      %v1912 = vpop.xlane.xlu0 %1911
      %v1913 = vsel %vm1654, %v1612, 0.0
      %1914 = vadd.xlane.f32.xlu0 %v1913
      %v1915 = vpop.xlane.xlu0 %1914
      %v1916 = vsel %vm1654, %v1613, 0.0
      %1917 = vadd.xlane.f32.xlu0 %v1916
      %v1918 = vpop.xlane.xlu0 %1917
      %v1919 = vsel %vm1654, %v1614, 0.0
      %1920 = vadd.xlane.f32.xlu0 %v1919
      %v1921 = vpop.xlane.xlu0 %1920
      %v1922 = vsel %vm1654, %v1615, 0.0
      %1923 = vadd.xlane.f32.xlu0 %v1922
      %v1924 = vpop.xlane.xlu0 %1923
      %v1925 = vsel %vm1654, %v1616, 0.0
      %1926 = vadd.xlane.f32.xlu0 %v1925
      %v1927 = vpop.xlane.xlu0 %1926
      %v1928 = vsel %vm1654, %v1617, 0.0
      %1929 = vadd.xlane.f32.xlu0 %v1928
      %v1930 = vpop.xlane.xlu0 %1929
      %v1931 = vsel %vm1654, %v1618, 0.0
      %1932 = vadd.xlane.f32.xlu0 %v1931
      %v1933 = vpop.xlane.xlu0 %1932
      %v1934 = vsel %vm1654, %v1619, 0.0
      %1935 = vadd.xlane.f32.xlu0 %v1934
      %v1936 = vpop.xlane.xlu0 %1935
      %v1937 = vsel %vm1654, %v1620, 0.0
      %1938 = vadd.xlane.f32.xlu0 %v1937
      %v1939 = vpop.xlane.xlu0 %1938
      %v1940 = vsel %vm1654, %v1621, 0.0
      %1941 = vadd.xlane.f32.xlu0 %v1940
      %v1942 = vpop.xlane.xlu0 %1941
      %v1943 = vsel %vm1654, %v1622, 0.0
      %1944 = vadd.xlane.f32.xlu0 %v1943
      %v1945 = vpop.xlane.xlu0 %1944
      %v1946 = vsel %vm1654, %v1623, 0.0
      %1947 = vadd.xlane.f32.xlu0 %v1946
      %v1948 = vpop.xlane.xlu0 %1947
      %v1949 = vsel %vm1654, %v1624, 0.0
      %1950 = vadd.xlane.f32.xlu0 %v1949
      %v1951 = vpop.xlane.xlu0 %1950
      %v1952 = vsel %vm1654, %v1625, 0.0
      %1953 = vadd.xlane.f32.xlu0 %v1952
      %v1954 = vpop.xlane.xlu0 %1953
      %v1955 = vsel %vm1654, %v1626, 0.0
      %1956 = vadd.xlane.f32.xlu0 %v1955
      %v1957 = vpop.xlane.xlu0 %1956
      %v1958 = vsel %vm1654, %v1627, 0.0
      %1959 = vadd.xlane.f32.xlu0 %v1958
      %v1960 = vpop.xlane.xlu0 %1959
      %v1961 = vsel %vm1654, %v1628, 0.0
      %1962 = vadd.xlane.f32.xlu0 %v1961
      %v1963 = vpop.xlane.xlu0 %1962
      %v1964 = vsel %vm1654, %v1629, 0.0
      %1965 = vadd.xlane.f32.xlu0 %v1964
      %v1966 = vpop.xlane.xlu0 %1965
      %v1967 = vsel %vm1654, %v1630, 0.0
      %1968 = vadd.xlane.f32.xlu0 %v1967
      %v1969 = vpop.xlane.xlu0 %1968
      %v1970 = vsel %vm1654, %v1631, 0.0
      %1971 = vadd.xlane.f32.xlu0 %v1970
      %v1972 = vpop.xlane.xlu0 %1971
      %v1973 = vsel %vm1654, %v1632, 0.0
      %1974 = vadd.xlane.f32.xlu0 %v1973
      %v1975 = vpop.xlane.xlu0 %1974
      %v1976 = vsel %vm1654, %v1633, 0.0
      %1977 = vadd.xlane.f32.xlu0 %v1976
      %v1978 = vpop.xlane.xlu0 %1977
      %v1979 = vsel %vm1654, %v1634, 0.0
      %1980 = vadd.xlane.f32.xlu0 %v1979
      %v1981 = vpop.xlane.xlu0 %1980
      %v1982 = vsel %vm1654, %v1635, 0.0
      %1983 = vadd.xlane.f32.xlu0 %v1982
      %v1984 = vpop.xlane.xlu0 %1983
      %v1985 = vsel %vm1654, %v1636, 0.0
      %1986 = vadd.xlane.f32.xlu0 %v1985
      %v1987 = vpop.xlane.xlu0 %1986
      %v1988 = vsel %vm1654, %v1637, 0.0
      %1989 = vadd.xlane.f32.xlu0 %v1988
      %v1990 = vpop.xlane.xlu0 %1989
      %v1991 = vsel %vm1654, %v1638, 0.0
      %1992 = vadd.xlane.f32.xlu0 %v1991
      %v1993 = vpop.xlane.xlu0 %1992
      %v1994 = vsel %vm1654, %v1639, 0.0
      %1995 = vadd.xlane.f32.xlu0 %v1994
      %v1996 = vpop.xlane.xlu0 %1995
      %v1997 = vsel %vm1654, %v1640, 0.0
      %1998 = vadd.xlane.f32.xlu0 %v1997
      %v1999 = vpop.xlane.xlu0 %1998
      %v2000 = vsel %vm1654, %v1641, 0.0
      %2001 = vadd.xlane.f32.xlu0 %v2000
      %v2002 = vpop.xlane.xlu0 %2001
      %v2003 = vsel %vm1654, %v1642, 0.0
      %2004 = vadd.xlane.f32.xlu0 %v2003
      %v2005 = vpop.xlane.xlu0 %2004
      %v2006 = vsel %vm1654, %v1643, 0.0
      %2007 = vadd.xlane.f32.xlu0 %v2006
      %v2008 = vpop.xlane.xlu0 %2007
      %v2009 = vsel %vm1654, %v1644, 0.0
      %2010 = vadd.xlane.f32.xlu0 %v2009
      %v2011 = vpop.xlane.xlu0 %2010
      %v2012 = vsel %vm1654, %v1645, 0.0
      %2013 = vadd.xlane.f32.xlu0 %v2012
      %v2014 = vpop.xlane.xlu0 %2013
      %v2015 = vsel %vm1654, %v1646, 0.0
      %2016 = vadd.xlane.f32.xlu0 %v2015
      %v2017 = vpop.xlane.xlu0 %2016
      %v2018 = vsel %vm1654, %v1647, 0.0
      %2019 = vadd.xlane.f32.xlu0 %v2018
      %v2020 = vpop.xlane.xlu0 %2019
      %v2021 = vsel %vm1654, %v1648, 0.0
      %2022 = vadd.xlane.f32.xlu0 %v2021
      %v2023 = vpop.xlane.xlu0 %2022
      %v2024 = vsel %vm1654, %v1649, 0.0
      %2025 = vadd.xlane.f32.xlu0 %v2024
      %v2026 = vpop.xlane.xlu0 %2025
      %v2027 = vsel %vm1654, %v1650, 0.0
      %2028 = vadd.xlane.f32.xlu0 %v2027
      %v2029 = vpop.xlane.xlu0 %2028
      %v2030 = vsel %vm1654, %v1651, 0.0
      %2031 = vadd.xlane.f32.xlu0 %v2030
      %v2032 = vpop.xlane.xlu0 %2031
      %v2033 = vsel %vm1654, %v1652, 0.0
      %2034 = vadd.xlane.f32.xlu0 %v2033
      %v2035 = vpop.xlane.xlu0 %2034
      %v2036 = vsel %vm1654, %v1653, 0.0
      %2037 = vadd.xlane.f32.xlu0 %v2036
      %v2038 = vpop.xlane.xlu0 %2037
      %s2040 = vtos %v295
      %v2041 = vstv %s2040
      %v2043 = vadd.f32 %v1657, %v2041
      %v2044 = vadd.f32 %v1660, %v2041
      %v2045 = vadd.f32 %v1663, %v2041
      %v2046 = vadd.f32 %v1666, %v2041
      %v2047 = vadd.f32 %v1669, %v2041
      %v2048 = vadd.f32 %v1672, %v2041
      %v2049 = vadd.f32 %v1675, %v2041
      %v2050 = vadd.f32 %v1678, %v2041
      %v2051 = vadd.f32 %v1681, %v2041
      %v2052 = vadd.f32 %v1684, %v2041
      %v2053 = vadd.f32 %v1687, %v2041
      %v2054 = vadd.f32 %v1690, %v2041
      %v2055 = vadd.f32 %v1693, %v2041
      %v2056 = vadd.f32 %v1696, %v2041
      %v2057 = vadd.f32 %v1699, %v2041
      %v2058 = vadd.f32 %v1702, %v2041
      %v2059 = vadd.f32 %v1705, %v2041
      %v2060 = vadd.f32 %v1708, %v2041
      %v2061 = vadd.f32 %v1711, %v2041
      %v2062 = vadd.f32 %v1714, %v2041
      %v2063 = vadd.f32 %v1717, %v2041
      %v2064 = vadd.f32 %v1720, %v2041
      %v2065 = vadd.f32 %v1723, %v2041
      %v2066 = vadd.f32 %v1726, %v2041
      %v2067 = vadd.f32 %v1729, %v2041
      %v2068 = vadd.f32 %v1732, %v2041
      %v2069 = vadd.f32 %v1735, %v2041
      %v2070 = vadd.f32 %v1738, %v2041
      %v2071 = vadd.f32 %v1741, %v2041
      %v2072 = vadd.f32 %v1744, %v2041
      %v2073 = vadd.f32 %v1747, %v2041
      %v2074 = vadd.f32 %v1750, %v2041
      %v2075 = vadd.f32 %v1753, %v2041
      %v2076 = vadd.f32 %v1756, %v2041
      %v2077 = vadd.f32 %v1759, %v2041
      %v2078 = vadd.f32 %v1762, %v2041
      %v2079 = vadd.f32 %v1765, %v2041
      %v2080 = vadd.f32 %v1768, %v2041
      %v2081 = vadd.f32 %v1771, %v2041
      %v2082 = vadd.f32 %v1774, %v2041
      %v2083 = vadd.f32 %v1777, %v2041
      %v2084 = vadd.f32 %v1780, %v2041
      %v2085 = vadd.f32 %v1783, %v2041
      %v2086 = vadd.f32 %v1786, %v2041
      %v2087 = vadd.f32 %v1789, %v2041
      %v2088 = vadd.f32 %v1792, %v2041
      %v2089 = vadd.f32 %v1795, %v2041
      %v2090 = vadd.f32 %v1798, %v2041
      %v2091 = vadd.f32 %v1801, %v2041
      %v2092 = vadd.f32 %v1804, %v2041
      %v2093 = vadd.f32 %v1807, %v2041
      %v2094 = vadd.f32 %v1810, %v2041
      %v2095 = vadd.f32 %v1813, %v2041
      %v2096 = vadd.f32 %v1816, %v2041
      %v2097 = vadd.f32 %v1819, %v2041
      %v2098 = vadd.f32 %v1822, %v2041
      %v2099 = vadd.f32 %v1825, %v2041
      %v2100 = vadd.f32 %v1828, %v2041
      %v2101 = vadd.f32 %v1831, %v2041
      %v2102 = vadd.f32 %v1834, %v2041
      %v2103 = vadd.f32 %v1837, %v2041
      %v2104 = vadd.f32 %v1840, %v2041
      %v2105 = vadd.f32 %v1843, %v2041
      %v2106 = vadd.f32 %v1846, %v2041
      %v2107 = vadd.f32 %v1849, %v2041
      %v2108 = vadd.f32 %v1852, %v2041
      %v2109 = vadd.f32 %v1855, %v2041
      %v2110 = vadd.f32 %v1858, %v2041
      %v2111 = vadd.f32 %v1861, %v2041
      %v2112 = vadd.f32 %v1864, %v2041
      %v2113 = vadd.f32 %v1867, %v2041
      %v2114 = vadd.f32 %v1870, %v2041
      %v2115 = vadd.f32 %v1873, %v2041
      %v2116 = vadd.f32 %v1876, %v2041
      %v2117 = vadd.f32 %v1879, %v2041
      %v2118 = vadd.f32 %v1882, %v2041
      %v2119 = vadd.f32 %v1885, %v2041
      %v2120 = vadd.f32 %v1888, %v2041
      %v2121 = vadd.f32 %v1891, %v2041
      %v2122 = vadd.f32 %v1894, %v2041
      %v2123 = vadd.f32 %v1897, %v2041
      %v2124 = vadd.f32 %v1900, %v2041
      %v2125 = vadd.f32 %v1903, %v2041
      %v2126 = vadd.f32 %v1906, %v2041
      %v2127 = vadd.f32 %v1909, %v2041
      %v2128 = vadd.f32 %v1912, %v2041
      %v2129 = vadd.f32 %v1915, %v2041
      %v2130 = vadd.f32 %v1918, %v2041
      %v2131 = vadd.f32 %v1921, %v2041
      %v2132 = vadd.f32 %v1924, %v2041
      %v2133 = vadd.f32 %v1927, %v2041
      %v2134 = vadd.f32 %v1930, %v2041
      %v2135 = vadd.f32 %v1933, %v2041
      %v2136 = vadd.f32 %v1936, %v2041
      %v2137 = vadd.f32 %v1939, %v2041
      %v2138 = vadd.f32 %v1942, %v2041
      %v2139 = vadd.f32 %v1945, %v2041
      %v2140 = vadd.f32 %v1948, %v2041
      %v2141 = vadd.f32 %v1951, %v2041
      %v2142 = vadd.f32 %v1954, %v2041
      %v2143 = vadd.f32 %v1957, %v2041
      %v2144 = vadd.f32 %v1960, %v2041
      %v2145 = vadd.f32 %v1963, %v2041
      %v2146 = vadd.f32 %v1966, %v2041
      %v2147 = vadd.f32 %v1969, %v2041
      %v2148 = vadd.f32 %v1972, %v2041
      %v2149 = vadd.f32 %v1975, %v2041
      %v2150 = vadd.f32 %v1978, %v2041
      %v2151 = vadd.f32 %v1981, %v2041
      %v2152 = vadd.f32 %v1984, %v2041
      %v2153 = vadd.f32 %v1987, %v2041
      %v2154 = vadd.f32 %v1990, %v2041
      %v2155 = vadd.f32 %v1993, %v2041
      %v2156 = vadd.f32 %v1996, %v2041
      %v2157 = vadd.f32 %v1999, %v2041
      %v2158 = vadd.f32 %v2002, %v2041
      %v2159 = vadd.f32 %v2005, %v2041
      %v2160 = vadd.f32 %v2008, %v2041
      %v2161 = vadd.f32 %v2011, %v2041
      %v2162 = vadd.f32 %v2014, %v2041
      %v2163 = vadd.f32 %v2017, %v2041
      %v2164 = vadd.f32 %v2020, %v2041
      %v2165 = vadd.f32 %v2023, %v2041
      %v2166 = vadd.f32 %v2026, %v2041
      %v2167 = vadd.f32 %v2029, %v2041
      %v2168 = vadd.f32 %v2032, %v2041
      %v2169 = vadd.f32 %v2035, %v2041
      %v2170 = vadd.f32 %v2038, %v2041
      %v2299 = vlaneseq
      %v2300 = vand.u32 %v2299, 127
      %v2301 = vlaneseq
      %v2302 = vshrl.u32 %v2301, 7
      %v2303 = vsub.s32 %v2300, %v2302
      %v2304 = vrot.slane %v2043, %v2303
      %v2305 = vadd.s32 %v2300, 4294967288
      %v2306 = vlaneseq
      %v2307 = vshrl.u32 %v2306, 7
      %v2308 = vsub.s32 %v2305, %v2307
      %v2309 = vrot.slane %v2044, %v2308
      %vm2310 = vcmask 130112
      %v2311 = vsel %vm2310, %v2309, %v2304
      %v2312 = vadd.s32 %v2300, 4294967280
      %v2313 = vlaneseq
      %v2314 = vshrl.u32 %v2313, 7
      %v2315 = vsub.s32 %v2312, %v2314
      %v2316 = vrot.slane %v2045, %v2315
      %vm2317 = vcmask 195712
      %v2318 = vsel %vm2317, %v2316, %v2311
      %v2319 = vadd.s32 %v2300, 4294967272
      %v2320 = vlaneseq
      %v2321 = vshrl.u32 %v2320, 7
      %v2322 = vsub.s32 %v2319, %v2321
      %v2323 = vrot.slane %v2046, %v2322
      %vm2324 = vcmask 261312
      %v2325 = vsel %vm2324, %v2323, %v2318
      %v2326 = vadd.s32 %v2300, 4294967264
      %v2327 = vlaneseq
      %v2328 = vshrl.u32 %v2327, 7
      %v2329 = vsub.s32 %v2326, %v2328
      %v2330 = vrot.slane %v2047, %v2329
      %vm2331 = vcmask 326912
      %v2332 = vsel %vm2331, %v2330, %v2325
      %v2333 = vadd.s32 %v2300, 4294967256
      %v2334 = vlaneseq
      %v2335 = vshrl.u32 %v2334, 7
      %v2336 = vsub.s32 %v2333, %v2335
      %v2337 = vrot.slane %v2048, %v2336
      %vm2338 = vcmask 392512
      %v2339 = vsel %vm2338, %v2337, %v2332
      %v2340 = vadd.s32 %v2300, 4294967248
      %v2341 = vlaneseq
      %v2342 = vshrl.u32 %v2341, 7
      %v2343 = vsub.s32 %v2340, %v2342
      %v2344 = vrot.slane %v2049, %v2343
      %vm2345 = vcmask 458112
      %v2346 = vsel %vm2345, %v2344, %v2339
      %v2347 = vadd.s32 %v2300, 4294967240
      %v2348 = vlaneseq
      %v2349 = vshrl.u32 %v2348, 7
      %v2350 = vsub.s32 %v2347, %v2349
      %v2351 = vrot.slane %v2050, %v2350
      %vm2352 = vcmask 523712
      %v2353 = vsel %vm2352, %v2351, %v2346
      %v2354 = vadd.s32 %v2300, 4294967232
      %v2355 = vlaneseq
      %v2356 = vshrl.u32 %v2355, 7
      %v2357 = vsub.s32 %v2354, %v2356
      %v2358 = vrot.slane %v2051, %v2357
      %vm2359 = vcmask 589312
      %v2360 = vsel %vm2359, %v2358, %v2353
      %v2361 = vadd.s32 %v2300, 4294967224
      %v2362 = vlaneseq
      %v2363 = vshrl.u32 %v2362, 7
      %v2364 = vsub.s32 %v2361, %v2363
      %v2365 = vrot.slane %v2052, %v2364
      %vm2366 = vcmask 654912
      %v2367 = vsel %vm2366, %v2365, %v2360
      %v2368 = vadd.s32 %v2300, 4294967216
      %v2369 = vlaneseq
      %v2370 = vshrl.u32 %v2369, 7
      %v2371 = vsub.s32 %v2368, %v2370
      %v2372 = vrot.slane %v2053, %v2371
      %vm2373 = vcmask 720512
      %v2374 = vsel %vm2373, %v2372, %v2367
      %v2375 = vadd.s32 %v2300, 4294967208
      %v2376 = vlaneseq
      %v2377 = vshrl.u32 %v2376, 7
      %v2378 = vsub.s32 %v2375, %v2377
      %v2379 = vrot.slane %v2054, %v2378
      %vm2380 = vcmask 786112
      %v2381 = vsel %vm2380, %v2379, %v2374
      %v2382 = vadd.s32 %v2300, 4294967200
      %v2383 = vlaneseq
      %v2384 = vshrl.u32 %v2383, 7
      %v2385 = vsub.s32 %v2382, %v2384
      %v2386 = vrot.slane %v2055, %v2385
      %vm2387 = vcmask 851712
      %v2388 = vsel %vm2387, %v2386, %v2381
      %v2389 = vadd.s32 %v2300, 4294967192
      %v2390 = vlaneseq
      %v2391 = vshrl.u32 %v2390, 7
      %v2392 = vsub.s32 %v2389, %v2391
      %v2393 = vrot.slane %v2056, %v2392
      %vm2394 = vcmask 917312
      %v2395 = vsel %vm2394, %v2393, %v2388
      %v2396 = vadd.s32 %v2300, 4294967184
      %v2397 = vlaneseq
      %v2398 = vshrl.u32 %v2397, 7
      %v2399 = vsub.s32 %v2396, %v2398
      %v2400 = vrot.slane %v2057, %v2399
      %vm2401 = vcmask 982912
      %v2402 = vsel %vm2401, %v2400, %v2395
      %v2403 = vadd.s32 %v2300, 4294967176
      %v2404 = vlaneseq
      %v2405 = vshrl.u32 %v2404, 7
      %v2406 = vsub.s32 %v2403, %v2405
      %v2407 = vrot.slane %v2058, %v2406
      %vm2408 = vcmask 1048512
      %v2409 = vsel %vm2408, %v2407, %v2402
      %v2410 = vlaneseq
      %v2411 = vshrl.u32 %v2410, 7
      %v2412 = vsub.s32 %v2300, %v2411
      %v2413 = vrot.slane %v2059, %v2412
      %v2414 = vlaneseq
      %v2415 = vshrl.u32 %v2414, 7
      %v2416 = vsub.s32 %v2305, %v2415
      %v2417 = vrot.slane %v2060, %v2416
      %v2418 = vsel %vm2310, %v2417, %v2413
      %v2419 = vlaneseq
      %v2420 = vshrl.u32 %v2419, 7
      %v2421 = vsub.s32 %v2312, %v2420
      %v2422 = vrot.slane %v2061, %v2421
      %v2423 = vsel %vm2317, %v2422, %v2418
      %v2424 = vlaneseq
      %v2425 = vshrl.u32 %v2424, 7
      %v2426 = vsub.s32 %v2319, %v2425
      %v2427 = vrot.slane %v2062, %v2426
      %v2428 = vsel %vm2324, %v2427, %v2423
      %v2429 = vlaneseq
      %v2430 = vshrl.u32 %v2429, 7
      %v2431 = vsub.s32 %v2326, %v2430
      %v2432 = vrot.slane %v2063, %v2431
      %v2433 = vsel %vm2331, %v2432, %v2428
      %v2434 = vlaneseq
      %v2435 = vshrl.u32 %v2434, 7
      %v2436 = vsub.s32 %v2333, %v2435
      %v2437 = vrot.slane %v2064, %v2436
      %v2438 = vsel %vm2338, %v2437, %v2433
      %v2439 = vlaneseq
      %v2440 = vshrl.u32 %v2439, 7
      %v2441 = vsub.s32 %v2340, %v2440
      %v2442 = vrot.slane %v2065, %v2441
      %v2443 = vsel %vm2345, %v2442, %v2438
      %v2444 = vlaneseq
      %v2445 = vshrl.u32 %v2444, 7
      %v2446 = vsub.s32 %v2347, %v2445
      %v2447 = vrot.slane %v2066, %v2446
      %v2448 = vsel %vm2352, %v2447, %v2443
      %v2449 = vlaneseq
      %v2450 = vshrl.u32 %v2449, 7
      %v2451 = vsub.s32 %v2354, %v2450
      %v2452 = vrot.slane %v2067, %v2451
      %v2453 = vsel %vm2359, %v2452, %v2448
      %v2454 = vlaneseq
      %v2455 = vshrl.u32 %v2454, 7
      %v2456 = vsub.s32 %v2361, %v2455
      %v2457 = vrot.slane %v2068, %v2456
      %v2458 = vsel %vm2366, %v2457, %v2453
      %v2459 = vlaneseq
      %v2460 = vshrl.u32 %v2459, 7
      %v2461 = vsub.s32 %v2368, %v2460
      %v2462 = vrot.slane %v2069, %v2461
      %v2463 = vsel %vm2373, %v2462, %v2458
      %v2464 = vlaneseq
      %v2465 = vshrl.u32 %v2464, 7
      %v2466 = vsub.s32 %v2375, %v2465
      %v2467 = vrot.slane %v2070, %v2466
      %v2468 = vsel %vm2380, %v2467, %v2463
      %v2469 = vlaneseq
      %v2470 = vshrl.u32 %v2469, 7
      %v2471 = vsub.s32 %v2382, %v2470
      %v2472 = vrot.slane %v2071, %v2471
      %v2473 = vsel %vm2387, %v2472, %v2468
      %v2474 = vlaneseq
      %v2475 = vshrl.u32 %v2474, 7
      %v2476 = vsub.s32 %v2389, %v2475
      %v2477 = vrot.slane %v2072, %v2476
      %v2478 = vsel %vm2394, %v2477, %v2473
      %v2479 = vlaneseq
      %v2480 = vshrl.u32 %v2479, 7
      %v2481 = vsub.s32 %v2396, %v2480
      %v2482 = vrot.slane %v2073, %v2481
      %v2483 = vsel %vm2401, %v2482, %v2478
      %v2484 = vlaneseq
      %v2485 = vshrl.u32 %v2484, 7
      %v2486 = vsub.s32 %v2403, %v2485
      %v2487 = vrot.slane %v2074, %v2486
      %v2488 = vsel %vm2408, %v2487, %v2483
      %v2489 = vlaneseq
      %v2490 = vshrl.u32 %v2489, 7
      %v2491 = vsub.s32 %v2300, %v2490
      %v2492 = vrot.slane %v2075, %v2491
      %v2493 = vlaneseq
      %v2494 = vshrl.u32 %v2493, 7
      %v2495 = vsub.s32 %v2305, %v2494
      %v2496 = vrot.slane %v2076, %v2495
      %v2497 = vsel %vm2310, %v2496, %v2492
      %v2498 = vlaneseq
      %v2499 = vshrl.u32 %v2498, 7
      %v2500 = vsub.s32 %v2312, %v2499
      %v2501 = vrot.slane %v2077, %v2500
      %v2502 = vsel %vm2317, %v2501, %v2497
      %v2503 = vlaneseq
      %v2504 = vshrl.u32 %v2503, 7
      %v2505 = vsub.s32 %v2319, %v2504
      %v2506 = vrot.slane %v2078, %v2505
      %v2507 = vsel %vm2324, %v2506, %v2502
      %v2508 = vlaneseq
      %v2509 = vshrl.u32 %v2508, 7
      %v2510 = vsub.s32 %v2326, %v2509
      %v2511 = vrot.slane %v2079, %v2510
      %v2512 = vsel %vm2331, %v2511, %v2507
      %v2513 = vlaneseq
      %v2514 = vshrl.u32 %v2513, 7
      %v2515 = vsub.s32 %v2333, %v2514
      %v2516 = vrot.slane %v2080, %v2515
      %v2517 = vsel %vm2338, %v2516, %v2512
      %v2518 = vlaneseq
      %v2519 = vshrl.u32 %v2518, 7
      %v2520 = vsub.s32 %v2340, %v2519
      %v2521 = vrot.slane %v2081, %v2520
      %v2522 = vsel %vm2345, %v2521, %v2517
      %v2523 = vlaneseq
      %v2524 = vshrl.u32 %v2523, 7
      %v2525 = vsub.s32 %v2347, %v2524
      %v2526 = vrot.slane %v2082, %v2525
      %v2527 = vsel %vm2352, %v2526, %v2522
      %v2528 = vlaneseq
      %v2529 = vshrl.u32 %v2528, 7
      %v2530 = vsub.s32 %v2354, %v2529
      %v2531 = vrot.slane %v2083, %v2530
      %v2532 = vsel %vm2359, %v2531, %v2527
      %v2533 = vlaneseq
      %v2534 = vshrl.u32 %v2533, 7
      %v2535 = vsub.s32 %v2361, %v2534
      %v2536 = vrot.slane %v2084, %v2535
      %v2537 = vsel %vm2366, %v2536, %v2532
      %v2538 = vlaneseq
      %v2539 = vshrl.u32 %v2538, 7
      %v2540 = vsub.s32 %v2368, %v2539
      %v2541 = vrot.slane %v2085, %v2540
      %v2542 = vsel %vm2373, %v2541, %v2537
      %v2543 = vlaneseq
      %v2544 = vshrl.u32 %v2543, 7
      %v2545 = vsub.s32 %v2375, %v2544
      %v2546 = vrot.slane %v2086, %v2545
      %v2547 = vsel %vm2380, %v2546, %v2542
      %v2548 = vlaneseq
      %v2549 = vshrl.u32 %v2548, 7
      %v2550 = vsub.s32 %v2382, %v2549
      %v2551 = vrot.slane %v2087, %v2550
      %v2552 = vsel %vm2387, %v2551, %v2547
      %v2553 = vlaneseq
      %v2554 = vshrl.u32 %v2553, 7
      %v2555 = vsub.s32 %v2389, %v2554
      %v2556 = vrot.slane %v2088, %v2555
      %v2557 = vsel %vm2394, %v2556, %v2552
      %v2558 = vlaneseq
      %v2559 = vshrl.u32 %v2558, 7
      %v2560 = vsub.s32 %v2396, %v2559
      %v2561 = vrot.slane %v2089, %v2560
      %v2562 = vsel %vm2401, %v2561, %v2557
      %v2563 = vlaneseq
      %v2564 = vshrl.u32 %v2563, 7
      %v2565 = vsub.s32 %v2403, %v2564
      %v2566 = vrot.slane %v2090, %v2565
      %v2567 = vsel %vm2408, %v2566, %v2562
      %v2568 = vlaneseq
      %v2569 = vshrl.u32 %v2568, 7
      %v2570 = vsub.s32 %v2300, %v2569
      %v2571 = vrot.slane %v2091, %v2570
      %v2572 = vlaneseq
      %v2573 = vshrl.u32 %v2572, 7
      %v2574 = vsub.s32 %v2305, %v2573
      %v2575 = vrot.slane %v2092, %v2574
      %v2576 = vsel %vm2310, %v2575, %v2571
      %v2577 = vlaneseq
      %v2578 = vshrl.u32 %v2577, 7
      %v2579 = vsub.s32 %v2312, %v2578
      %v2580 = vrot.slane %v2093, %v2579
      %v2581 = vsel %vm2317, %v2580, %v2576
      %v2582 = vlaneseq
      %v2583 = vshrl.u32 %v2582, 7
      %v2584 = vsub.s32 %v2319, %v2583
      %v2585 = vrot.slane %v2094, %v2584
      %v2586 = vsel %vm2324, %v2585, %v2581
      %v2587 = vlaneseq
      %v2588 = vshrl.u32 %v2587, 7
      %v2589 = vsub.s32 %v2326, %v2588
      %v2590 = vrot.slane %v2095, %v2589
      %v2591 = vsel %vm2331, %v2590, %v2586
      %v2592 = vlaneseq
      %v2593 = vshrl.u32 %v2592, 7
      %v2594 = vsub.s32 %v2333, %v2593
      %v2595 = vrot.slane %v2096, %v2594
      %v2596 = vsel %vm2338, %v2595, %v2591
      %v2597 = vlaneseq
      %v2598 = vshrl.u32 %v2597, 7
      %v2599 = vsub.s32 %v2340, %v2598
      %v2600 = vrot.slane %v2097, %v2599
      %v2601 = vsel %vm2345, %v2600, %v2596
      %v2602 = vlaneseq
      %v2603 = vshrl.u32 %v2602, 7
      %v2604 = vsub.s32 %v2347, %v2603
      %v2605 = vrot.slane %v2098, %v2604
      %v2606 = vsel %vm2352, %v2605, %v2601
      %v2607 = vlaneseq
      %v2608 = vshrl.u32 %v2607, 7
      %v2609 = vsub.s32 %v2354, %v2608
      %v2610 = vrot.slane %v2099, %v2609
      %v2611 = vsel %vm2359, %v2610, %v2606
      %v2612 = vlaneseq
      %v2613 = vshrl.u32 %v2612, 7
      %v2614 = vsub.s32 %v2361, %v2613
      %v2615 = vrot.slane %v2100, %v2614
      %v2616 = vsel %vm2366, %v2615, %v2611
      %v2617 = vlaneseq
      %v2618 = vshrl.u32 %v2617, 7
      %v2619 = vsub.s32 %v2368, %v2618
      %v2620 = vrot.slane %v2101, %v2619
      %v2621 = vsel %vm2373, %v2620, %v2616
      %v2622 = vlaneseq
      %v2623 = vshrl.u32 %v2622, 7
      %v2624 = vsub.s32 %v2375, %v2623
      %v2625 = vrot.slane %v2102, %v2624
      %v2626 = vsel %vm2380, %v2625, %v2621
      %v2627 = vlaneseq
      %v2628 = vshrl.u32 %v2627, 7
      %v2629 = vsub.s32 %v2382, %v2628
      %v2630 = vrot.slane %v2103, %v2629
      %v2631 = vsel %vm2387, %v2630, %v2626
      %v2632 = vlaneseq
      %v2633 = vshrl.u32 %v2632, 7
      %v2634 = vsub.s32 %v2389, %v2633
      %v2635 = vrot.slane %v2104, %v2634
      %v2636 = vsel %vm2394, %v2635, %v2631
      %v2637 = vlaneseq
      %v2638 = vshrl.u32 %v2637, 7
      %v2639 = vsub.s32 %v2396, %v2638
      %v2640 = vrot.slane %v2105, %v2639
      %v2641 = vsel %vm2401, %v2640, %v2636
      %v2642 = vlaneseq
      %v2643 = vshrl.u32 %v2642, 7
      %v2644 = vsub.s32 %v2403, %v2643
      %v2645 = vrot.slane %v2106, %v2644
      %v2646 = vsel %vm2408, %v2645, %v2641
      %v2647 = vlaneseq
      %v2648 = vshrl.u32 %v2647, 7
      %v2649 = vsub.s32 %v2300, %v2648
      %v2650 = vrot.slane %v2107, %v2649
      %v2651 = vlaneseq
      %v2652 = vshrl.u32 %v2651, 7
      %v2653 = vsub.s32 %v2305, %v2652
      %v2654 = vrot.slane %v2108, %v2653
      %v2655 = vsel %vm2310, %v2654, %v2650
      %v2656 = vlaneseq
      %v2657 = vshrl.u32 %v2656, 7
      %v2658 = vsub.s32 %v2312, %v2657
      %v2659 = vrot.slane %v2109, %v2658
      %v2660 = vsel %vm2317, %v2659, %v2655
      %v2661 = vlaneseq
      %v2662 = vshrl.u32 %v2661, 7
      %v2663 = vsub.s32 %v2319, %v2662
      %v2664 = vrot.slane %v2110, %v2663
      %v2665 = vsel %vm2324, %v2664, %v2660
      %v2666 = vlaneseq
      %v2667 = vshrl.u32 %v2666, 7
      %v2668 = vsub.s32 %v2326, %v2667
      %v2669 = vrot.slane %v2111, %v2668
      %v2670 = vsel %vm2331, %v2669, %v2665
      %v2671 = vlaneseq
      %v2672 = vshrl.u32 %v2671, 7
      %v2673 = vsub.s32 %v2333, %v2672
      %v2674 = vrot.slane %v2112, %v2673
      %v2675 = vsel %vm2338, %v2674, %v2670
      %v2676 = vlaneseq
      %v2677 = vshrl.u32 %v2676, 7
      %v2678 = vsub.s32 %v2340, %v2677
      %v2679 = vrot.slane %v2113, %v2678
      %v2680 = vsel %vm2345, %v2679, %v2675
      %v2681 = vlaneseq
      %v2682 = vshrl.u32 %v2681, 7
      %v2683 = vsub.s32 %v2347, %v2682
      %v2684 = vrot.slane %v2114, %v2683
      %v2685 = vsel %vm2352, %v2684, %v2680
      %v2686 = vlaneseq
      %v2687 = vshrl.u32 %v2686, 7
      %v2688 = vsub.s32 %v2354, %v2687
      %v2689 = vrot.slane %v2115, %v2688
      %v2690 = vsel %vm2359, %v2689, %v2685
      %v2691 = vlaneseq
      %v2692 = vshrl.u32 %v2691, 7
      %v2693 = vsub.s32 %v2361, %v2692
      %v2694 = vrot.slane %v2116, %v2693
      %v2695 = vsel %vm2366, %v2694, %v2690
      %v2696 = vlaneseq
      %v2697 = vshrl.u32 %v2696, 7
      %v2698 = vsub.s32 %v2368, %v2697
      %v2699 = vrot.slane %v2117, %v2698
      %v2700 = vsel %vm2373, %v2699, %v2695
      %v2701 = vlaneseq
      %v2702 = vshrl.u32 %v2701, 7
      %v2703 = vsub.s32 %v2375, %v2702
      %v2704 = vrot.slane %v2118, %v2703
      %v2705 = vsel %vm2380, %v2704, %v2700
      %v2706 = vlaneseq
      %v2707 = vshrl.u32 %v2706, 7
      %v2708 = vsub.s32 %v2382, %v2707
      %v2709 = vrot.slane %v2119, %v2708
      %v2710 = vsel %vm2387, %v2709, %v2705
      %v2711 = vlaneseq
      %v2712 = vshrl.u32 %v2711, 7
      %v2713 = vsub.s32 %v2389, %v2712
      %v2714 = vrot.slane %v2120, %v2713
      %v2715 = vsel %vm2394, %v2714, %v2710
      %v2716 = vlaneseq
      %v2717 = vshrl.u32 %v2716, 7
      %v2718 = vsub.s32 %v2396, %v2717
      %v2719 = vrot.slane %v2121, %v2718
      %v2720 = vsel %vm2401, %v2719, %v2715
      %v2721 = vlaneseq
      %v2722 = vshrl.u32 %v2721, 7
      %v2723 = vsub.s32 %v2403, %v2722
      %v2724 = vrot.slane %v2122, %v2723
      %v2725 = vsel %vm2408, %v2724, %v2720
      %v2726 = vlaneseq
      %v2727 = vshrl.u32 %v2726, 7
      %v2728 = vsub.s32 %v2300, %v2727
      %v2729 = vrot.slane %v2123, %v2728
      %v2730 = vlaneseq
      %v2731 = vshrl.u32 %v2730, 7
      %v2732 = vsub.s32 %v2305, %v2731
      %v2733 = vrot.slane %v2124, %v2732
      %v2734 = vsel %vm2310, %v2733, %v2729
      %v2735 = vlaneseq
      %v2736 = vshrl.u32 %v2735, 7
      %v2737 = vsub.s32 %v2312, %v2736
      %v2738 = vrot.slane %v2125, %v2737
      %v2739 = vsel %vm2317, %v2738, %v2734
      %v2740 = vlaneseq
      %v2741 = vshrl.u32 %v2740, 7
      %v2742 = vsub.s32 %v2319, %v2741
      %v2743 = vrot.slane %v2126, %v2742
      %v2744 = vsel %vm2324, %v2743, %v2739
      %v2745 = vlaneseq
      %v2746 = vshrl.u32 %v2745, 7
      %v2747 = vsub.s32 %v2326, %v2746
      %v2748 = vrot.slane %v2127, %v2747
      %v2749 = vsel %vm2331, %v2748, %v2744
      %v2750 = vlaneseq
      %v2751 = vshrl.u32 %v2750, 7
      %v2752 = vsub.s32 %v2333, %v2751
      %v2753 = vrot.slane %v2128, %v2752
      %v2754 = vsel %vm2338, %v2753, %v2749
      %v2755 = vlaneseq
      %v2756 = vshrl.u32 %v2755, 7
      %v2757 = vsub.s32 %v2340, %v2756
      %v2758 = vrot.slane %v2129, %v2757
      %v2759 = vsel %vm2345, %v2758, %v2754
      %v2760 = vlaneseq
      %v2761 = vshrl.u32 %v2760, 7
      %v2762 = vsub.s32 %v2347, %v2761
      %v2763 = vrot.slane %v2130, %v2762
      %v2764 = vsel %vm2352, %v2763, %v2759
      %v2765 = vlaneseq
      %v2766 = vshrl.u32 %v2765, 7
      %v2767 = vsub.s32 %v2354, %v2766
      %v2768 = vrot.slane %v2131, %v2767
      %v2769 = vsel %vm2359, %v2768, %v2764
      %v2770 = vlaneseq
      %v2771 = vshrl.u32 %v2770, 7
      %v2772 = vsub.s32 %v2361, %v2771
      %v2773 = vrot.slane %v2132, %v2772
      %v2774 = vsel %vm2366, %v2773, %v2769
      %v2775 = vlaneseq
      %v2776 = vshrl.u32 %v2775, 7
      %v2777 = vsub.s32 %v2368, %v2776
      %v2778 = vrot.slane %v2133, %v2777
      %v2779 = vsel %vm2373, %v2778, %v2774
      %v2780 = vlaneseq
      %v2781 = vshrl.u32 %v2780, 7
      %v2782 = vsub.s32 %v2375, %v2781
      %v2783 = vrot.slane %v2134, %v2782
      %v2784 = vsel %vm2380, %v2783, %v2779
      %v2785 = vlaneseq
      %v2786 = vshrl.u32 %v2785, 7
      %v2787 = vsub.s32 %v2382, %v2786
      %v2788 = vrot.slane %v2135, %v2787
      %v2789 = vsel %vm2387, %v2788, %v2784
      %v2790 = vlaneseq
      %v2791 = vshrl.u32 %v2790, 7
      %v2792 = vsub.s32 %v2389, %v2791
      %v2793 = vrot.slane %v2136, %v2792
      %v2794 = vsel %vm2394, %v2793, %v2789
      %v2795 = vlaneseq
      %v2796 = vshrl.u32 %v2795, 7
      %v2797 = vsub.s32 %v2396, %v2796
      %v2798 = vrot.slane %v2137, %v2797
      %v2799 = vsel %vm2401, %v2798, %v2794
      %v2800 = vlaneseq
      %v2801 = vshrl.u32 %v2800, 7
      %v2802 = vsub.s32 %v2403, %v2801
      %v2803 = vrot.slane %v2138, %v2802
      %v2804 = vsel %vm2408, %v2803, %v2799
      %v2805 = vlaneseq
      %v2806 = vshrl.u32 %v2805, 7
      %v2807 = vsub.s32 %v2300, %v2806
      %v2808 = vrot.slane %v2139, %v2807
      %v2809 = vlaneseq
      %v2810 = vshrl.u32 %v2809, 7
      %v2811 = vsub.s32 %v2305, %v2810
      %v2812 = vrot.slane %v2140, %v2811
      %v2813 = vsel %vm2310, %v2812, %v2808
      %v2814 = vlaneseq
      %v2815 = vshrl.u32 %v2814, 7
      %v2816 = vsub.s32 %v2312, %v2815
      %v2817 = vrot.slane %v2141, %v2816
      %v2818 = vsel %vm2317, %v2817, %v2813
      %v2819 = vlaneseq
      %v2820 = vshrl.u32 %v2819, 7
      %v2821 = vsub.s32 %v2319, %v2820
      %v2822 = vrot.slane %v2142, %v2821
      %v2823 = vsel %vm2324, %v2822, %v2818
      %v2824 = vlaneseq
      %v2825 = vshrl.u32 %v2824, 7
      %v2826 = vsub.s32 %v2326, %v2825
      %v2827 = vrot.slane %v2143, %v2826
      %v2828 = vsel %vm2331, %v2827, %v2823
      %v2829 = vlaneseq
      %v2830 = vshrl.u32 %v2829, 7
      %v2831 = vsub.s32 %v2333, %v2830
      %v2832 = vrot.slane %v2144, %v2831
      %v2833 = vsel %vm2338, %v2832, %v2828
      %v2834 = vlaneseq
      %v2835 = vshrl.u32 %v2834, 7
      %v2836 = vsub.s32 %v2340, %v2835
      %v2837 = vrot.slane %v2145, %v2836
      %v2838 = vsel %vm2345, %v2837, %v2833
      %v2839 = vlaneseq
      %v2840 = vshrl.u32 %v2839, 7
      %v2841 = vsub.s32 %v2347, %v2840
      %v2842 = vrot.slane %v2146, %v2841
      %v2843 = vsel %vm2352, %v2842, %v2838
      %v2844 = vlaneseq
      %v2845 = vshrl.u32 %v2844, 7
      %v2846 = vsub.s32 %v2354, %v2845
      %v2847 = vrot.slane %v2147, %v2846
      %v2848 = vsel %vm2359, %v2847, %v2843
      %v2849 = vlaneseq
      %v2850 = vshrl.u32 %v2849, 7
      %v2851 = vsub.s32 %v2361, %v2850
      %v2852 = vrot.slane %v2148, %v2851
      %v2853 = vsel %vm2366, %v2852, %v2848
      %v2854 = vlaneseq
      %v2855 = vshrl.u32 %v2854, 7
      %v2856 = vsub.s32 %v2368, %v2855
      %v2857 = vrot.slane %v2149, %v2856
      %v2858 = vsel %vm2373, %v2857, %v2853
      %v2859 = vlaneseq
      %v2860 = vshrl.u32 %v2859, 7
      %v2861 = vsub.s32 %v2375, %v2860
      %v2862 = vrot.slane %v2150, %v2861
      %v2863 = vsel %vm2380, %v2862, %v2858
      %v2864 = vlaneseq
      %v2865 = vshrl.u32 %v2864, 7
      %v2866 = vsub.s32 %v2382, %v2865
      %v2867 = vrot.slane %v2151, %v2866
      %v2868 = vsel %vm2387, %v2867, %v2863
      %v2869 = vlaneseq
      %v2870 = vshrl.u32 %v2869, 7
      %v2871 = vsub.s32 %v2389, %v2870
      %v2872 = vrot.slane %v2152, %v2871
      %v2873 = vsel %vm2394, %v2872, %v2868
      %v2874 = vlaneseq
      %v2875 = vshrl.u32 %v2874, 7
      %v2876 = vsub.s32 %v2396, %v2875
      %v2877 = vrot.slane %v2153, %v2876
      %v2878 = vsel %vm2401, %v2877, %v2873
      %v2879 = vlaneseq
      %v2880 = vshrl.u32 %v2879, 7
      %v2881 = vsub.s32 %v2403, %v2880
      %v2882 = vrot.slane %v2154, %v2881
      %v2883 = vsel %vm2408, %v2882, %v2878
      %v2884 = vlaneseq
      %v2885 = vshrl.u32 %v2884, 7
      %v2886 = vsub.s32 %v2300, %v2885
      %v2887 = vrot.slane %v2155, %v2886
      %v2888 = vlaneseq
      %v2889 = vshrl.u32 %v2888, 7
      %v2890 = vsub.s32 %v2305, %v2889
      %v2891 = vrot.slane %v2156, %v2890
      %v2892 = vsel %vm2310, %v2891, %v2887
      %v2893 = vlaneseq
      %v2894 = vshrl.u32 %v2893, 7
      %v2895 = vsub.s32 %v2312, %v2894
      %v2896 = vrot.slane %v2157, %v2895
      %v2897 = vsel %vm2317, %v2896, %v2892
      %v2898 = vlaneseq
      %v2899 = vshrl.u32 %v2898, 7
      %v2900 = vsub.s32 %v2319, %v2899
      %v2901 = vrot.slane %v2158, %v2900
      %v2902 = vsel %vm2324, %v2901, %v2897
      %v2903 = vlaneseq
      %v2904 = vshrl.u32 %v2903, 7
      %v2905 = vsub.s32 %v2326, %v2904
      %v2906 = vrot.slane %v2159, %v2905
      %v2907 = vsel %vm2331, %v2906, %v2902
      %v2908 = vlaneseq
      %v2909 = vshrl.u32 %v2908, 7
      %v2910 = vsub.s32 %v2333, %v2909
      %v2911 = vrot.slane %v2160, %v2910
      %v2912 = vsel %vm2338, %v2911, %v2907
      %v2913 = vlaneseq
      %v2914 = vshrl.u32 %v2913, 7
      %v2915 = vsub.s32 %v2340, %v2914
      %v2916 = vrot.slane %v2161, %v2915
      %v2917 = vsel %vm2345, %v2916, %v2912
      %v2918 = vlaneseq
      %v2919 = vshrl.u32 %v2918, 7
      %v2920 = vsub.s32 %v2347, %v2919
      %v2921 = vrot.slane %v2162, %v2920
      %v2922 = vsel %vm2352, %v2921, %v2917
      %v2923 = vlaneseq
      %v2924 = vshrl.u32 %v2923, 7
      %v2925 = vsub.s32 %v2354, %v2924
      %v2926 = vrot.slane %v2163, %v2925
      %v2927 = vsel %vm2359, %v2926, %v2922
      %v2928 = vlaneseq
      %v2929 = vshrl.u32 %v2928, 7
      %v2930 = vsub.s32 %v2361, %v2929
      %v2931 = vrot.slane %v2164, %v2930
      %v2932 = vsel %vm2366, %v2931, %v2927
      %v2933 = vlaneseq
      %v2934 = vshrl.u32 %v2933, 7
      %v2935 = vsub.s32 %v2368, %v2934
      %v2936 = vrot.slane %v2165, %v2935
      %v2937 = vsel %vm2373, %v2936, %v2932
      %v2938 = vlaneseq
      %v2939 = vshrl.u32 %v2938, 7
      %v2940 = vsub.s32 %v2375, %v2939
      %v2941 = vrot.slane %v2166, %v2940
      %v2942 = vsel %vm2380, %v2941, %v2937
      %v2943 = vlaneseq
      %v2944 = vshrl.u32 %v2943, 7
      %v2945 = vsub.s32 %v2382, %v2944
      %v2946 = vrot.slane %v2167, %v2945
      %v2947 = vsel %vm2387, %v2946, %v2942
      %v2948 = vlaneseq
      %v2949 = vshrl.u32 %v2948, 7
      %v2950 = vsub.s32 %v2389, %v2949
      %v2951 = vrot.slane %v2168, %v2950
      %v2952 = vsel %vm2394, %v2951, %v2947
      %v2953 = vlaneseq
      %v2954 = vshrl.u32 %v2953, 7
      %v2955 = vsub.s32 %v2396, %v2954
      %v2956 = vrot.slane %v2169, %v2955
      %v2957 = vsel %vm2401, %v2956, %v2952
      %v2958 = vlaneseq
      %v2959 = vshrl.u32 %v2958, 7
      %v2960 = vsub.s32 %v2403, %v2959
      %v2961 = vrot.slane %v2170, %v2960
      %v2962 = vsel %vm2408, %v2961, %v2957
      %vm2963 = vcmask 1041409
      %v2964 = vsel %vm2963, %v2488, %v2409
      %vm2965 = vcmask 1042434
      %v2966 = vsel %vm2965, %v2567, %v2964
      %vm2967 = vcmask 1043459
      %v2968 = vsel %vm2967, %v2646, %v2966
      %vm2969 = vcmask 1044484
      %v2970 = vsel %vm2969, %v2725, %v2968
      %vm2971 = vcmask 1045509
      %v2972 = vsel %vm2971, %v2804, %v2970
      %vm2973 = vcmask 1046534
      %v2974 = vsel %vm2973, %v2883, %v2972
      %vm2975 = vcmask 1047559
      %v2976 = vsel %vm2975, %v2962, %v2974
      %2978 = vst [vmem:[%s163] sm:$0xff] %v2976
      %p2979 = scmp.lt.s32.totalorder %s13, 2
      %s2980 = scalar_select %p2979, %s13, 2
      %s2981 = smul.addr %s2980, 8
      %s2982 = scalar_lea.vmem %s2, %s2981
      // Predicated region
      $region29: #{dummy_model_forward.1} parent=27 // pred_check
        %p2983 = pneg %p78
      $region30: #{dummy_model_forward.1} parent=27 // pred_check_branch
        %2985 = sbr.rel (%p2983) target = $region32
      $region31: #{dummy_model_forward.1} parent=27 // pred_region
        _
      $region32: #{dummy_model_forward.1} parent=27 // pred_fallthru
        _
    $region28: #{dummy_model_forward.1} parent=5 // pred_fallthru
      _
    %p2986 = scmp.le.s32.totalorder 2, %s8
    // Predicated region
    $region33: #{dummy_model_forward.1} parent=5 // pred_check
      %p2987 = pneg %p2986
    $region34: #{dummy_model_forward.1} parent=5 // pred_check_branch
      %2989 = sbr.rel (%p2987) target = $region36
    $region35: #{dummy_model_forward.1} parent=5 // pred_region
      %s2990 = ssub.s32 %s8, 2
      // Predicated region
      $region37: #{dummy_model_forward.1} parent=35 // pred_check
        %p2991 = pneg %p84
      $region38: #{dummy_model_forward.1} parent=35 // pred_check_branch
        %2993 = sbr.rel (%p2991) target = $region40
      $region39: #{dummy_model_forward.1} parent=35 // pred_region
        %p2994 = scmp.lt.s32.totalorder %s14, 2
        %s2995 = scalar_select %p2994, %s14, 2
        %s2996 = smul.addr %s2995, 8
        %s2997 = scalar_lea.vmem %s2, %s2996
      $region40: #{dummy_model_forward.1} parent=35 // pred_fallthru
        _
    $region36: #{dummy_model_forward.1} parent=5 // pred_fallthru
      _
  $region6: #{dummy_model_forward.1} parent=0 // loop_footer
    %s12 = sadd.s32 1, %s8
  $region7: #{dummy_model_forward.1} parent=0 // loop_footer_branch
    %7 = sbr.rel target = $region3
  $region8: #{dummy_model_forward.1} parent=0 // loop_exit
    _

</llo_original>
